<compile_context>
chip_gen: v7x
topology: tpu7x:2x2x1
jax: 0.10.0
libtpu: 0.0.40
codegen_flags: <defaults>
</compile_context>

<pallas_src>
import jax
import jax.numpy as jnp
from jax import lax
from jax.experimental import pallas as pl
from jax.experimental.pallas import tpu as pltpu


def _round_up(x: int, m: int) -> int:
    return ((x + m - 1) // m) * m


def _seq_tile(s: int, max_tile: int) -> int:
    """Sequence tile: max_tile for long sequences, else S rounded up to 8 sublanes."""
    return max_tile if s >= max_tile else _round_up(s, 8)


def global_attention(h_cw, h_ap, weights, *, seq_tile=256, mxu_dtype=None,
                     key_buffering=None):
    """Pallas implementation of GlobalAttention.forward(h_cw, h_ap).

    seq_tile:      max sequence tile (used for both query and key axes).
    mxu_dtype:     optional dtype for MXU operands (e.g. jnp.bfloat16) with f32
                   accumulation; None -> inputs' native dtype.
    key_buffering: optional pipeline depth for the streamed key tiles
                   (e.g. 3 on v5e if profiling shows exposed DMA); None -> default.
    """
    B, S, Fin = h_cw.shape
    Bb, Sk, Fout = h_ap.shape
    assert B == Bb and Sk == S, "seq lengths must match for I_attn @ h_cw"
    assert weights.shape == (Fin, Fout)

    tile = _seq_tile(S, seq_tile)
    s_pad = _round_up(S, tile)
    needs_mask = s_pad != S
    if needs_mask:
        # Pad the sequence axis once (zeros). Padded keys are masked in-kernel;
        # padded query rows are sliced off below.  No-op for aligned S.
        h_cw = jnp.pad(h_cw, ((0, 0), (0, s_pad - S), (0, 0)))
        h_ap = jnp.pad(h_ap, ((0, 0), (0, s_pad - S), (0, 0)))
    n_tiles = s_pad // tile

    compute_dtype = jnp.dtype(mxu_dtype) if mxu_dtype is not None else h_cw.dtype

    def kernel(w_ref, hcw_q_ref, hap_k_ref, hcw_k_ref, out_ref,
               t_sc, l_sc, acc_sc):
        k = pl.program_id(2)

        @pl.when(k == 0)
        def _init():
            # Projection t = h_cw_q @ W, once per (batch, query tile), f32 acc,
            # stored once in the MXU-feed dtype (no per-key-step cast of t).
            t_sc[...] = jnp.dot(
                hcw_q_ref[0].astype(compute_dtype),
                w_ref[...].astype(compute_dtype),
                preferred_element_type=jnp.float32).astype(t_sc.dtype)
            l_sc[...] = jnp.zeros_like(l_sc)
            acc_sc[...] = jnp.zeros_like(acc_sc)

        h_ap_k = hap_k_ref[0].astype(compute_dtype)   # (tile, Fout)
        h_cw_k = hcw_k_ref[0].astype(compute_dtype)   # (tile, Fin)

        # logits tile = tanh(t @ h_ap_k^T): contract last axes via dot_general
        # dimension numbers (no explicit transpose / XLU traffic).
        s = lax.dot_general(t_sc[...], h_ap_k, (((1,), (1,)), ((), ())),
                            preferred_element_type=jnp.float32)
        # tanh bounds s to [-1, 1] so exp cannot overflow: no running max and
        # no rescale of the accumulators is needed (exact).
        p = jnp.exp(jnp.tanh(s))

        if needs_mask:
            key_ids = k * tile + lax.broadcasted_iota(jnp.int32, p.shape, 1)
            p = jnp.where(key_ids < S, p, 0.0)

        l_sc[...] += jnp.sum(p, axis=-1, keepdims=True)
        acc_sc[...] += jnp.dot(p.astype(compute_dtype), h_cw_k,
                               preferred_element_type=jnp.float32)

        @pl.when(k == pl.num_programs(2) - 1)
        def _finalize():
            # Exact division: runs once per (b, q) tile, so an approximate
            # reciprocal would save nothing and only cost accuracy.
            out_ref[0] = (acc_sc[...] / l_sc[...]).astype(out_ref.dtype)

    key_kwargs = {}
    if key_buffering is not None:
        key_kwargs["pipeline_mode"] = pl.Buffered(key_buffering)

    in_specs = [
        pl.BlockSpec((Fin, Fout), lambda b, q, k: (0, 0)),                       # W (whole)
        pl.BlockSpec((1, tile, Fin), lambda b, q, k: (b, q, 0)),                 # h_cw query tile
        pl.BlockSpec((1, tile, Fout), lambda b, q, k: (b, k, 0), **key_kwargs),  # h_ap key tile
        pl.BlockSpec((1, tile, Fin), lambda b, q, k: (b, k, 0), **key_kwargs),   # h_cw key tile
    ]
    out_spec = pl.BlockSpec((1, tile, Fin), lambda b, q, k: (b, q, 0))

    # VMEM budget derived from actual block + scratch bytes (double-buffered
    # pipeline blocks + scratch + slack), capped at 48 MiB for v7x's 64 MiB.
    in_item = jnp.dtype(h_cw.dtype).itemsize
    block_bytes = (Fin * Fout * jnp.dtype(weights.dtype).itemsize
                   + tile * Fin * in_item                                 # h_cw q tile
                   + tile * Fout * jnp.dtype(h_ap.dtype).itemsize         # h_ap k tile
                   + tile * Fin * in_item                                 # h_cw k tile
                   + tile * Fin * in_item)                                # out tile
    scratch_bytes = (tile * Fout * jnp.dtype(compute_dtype).itemsize      # t
                     + tile * 128 * 4                                     # l (lane-padded)
                     + tile * Fin * 4)                                    # acc
    vmem_limit = min(48 * 1024 * 1024,
                     max(16 * 1024 * 1024,
                         2 * block_bytes + scratch_bytes + (2 << 20)))

    out = pl.pallas_call(
        kernel,
        out_shape=jax.ShapeDtypeStruct((B, s_pad, Fin), h_cw.dtype),
        grid_spec=pltpu.PrefetchScalarGridSpec(
            num_scalar_prefetch=0,
            grid=(B, n_tiles, n_tiles),
            in_specs=in_specs,
            out_specs=out_spec,
            scratch_shapes=[
                pltpu.VMEM((tile, Fout), compute_dtype),  # t = h_cw_q @ W
                pltpu.VMEM((tile, 1), jnp.float32),       # softmax denominator l
                pltpu.VMEM((tile, Fin), jnp.float32),     # output accumulator
            ],
        ),
        compiler_params=pltpu.CompilerParams(
            dimension_semantics=("parallel", "parallel", "arbitrary"),
            vmem_limit_bytes=int(vmem_limit),
        ),
    )(weights, h_cw, h_ap, h_cw)

    return out[:, :S, :] if needs_mask else out


def global_attention_ref(h_cw, h_ap, weights):
    logits = jnp.tanh(
        jnp.einsum("bsi,io,bto->bst", h_cw.astype(jnp.float32),
                   weights.astype(jnp.float32), h_ap.astype(jnp.float32)))
    attn = jax.nn.softmax(logits, axis=-1)
    return jnp.einsum("bst,bti->bsi", attn, h_cw.astype(jnp.float32))


if __name__ == "__main__":
    # Small but tile-exercising shapes: feature dims below 128 lanes (streamed
    # unpadded) and a sequence that fills one 256-wide tile per batch.
    B, S = 2, 256
    in_features, out_features = 64, 48

    key = jax.random.PRNGKey(0)
    k_w, k_b, k_cw, k_ap = jax.random.split(key, 4)

    weights = jax.random.normal(k_w, (in_features, out_features), jnp.float32)
    bias = jax.random.normal(k_b, (out_features,), jnp.float32)  # declared but unused in forward()

    h_cw = jax.random.normal(k_cw, (B, S, in_features), jnp.float32)
    h_ap = jax.random.normal(k_ap, (B, S, out_features), jnp.float32)

    ref = global_attention_ref(h_cw, h_ap, weights)

    # Native (f32) MXU path: exact-division finalize -> tight tolerance.
    out = jax.block_until_ready(global_attention(h_cw, h_ap, weights))
    assert out.shape == (B, S, in_features)
    assert jnp.allclose(out, ref, atol=1e-4, rtol=1e-4), "f32 path mismatch vs reference"

    # bf16 MXU-feed path (several-x MXU rate on v5e/v6e/v7x), f32 accumulation.
    out_bf16 = jax.block_until_ready(
        global_attention(h_cw, h_ap, weights, mxu_dtype=jnp.bfloat16))
    assert jnp.allclose(out_bf16, ref, atol=5e-2, rtol=5e-2), "bf16 path mismatch vs reference"

    # Ragged sequence length: exercises the wrapper S-padding + in-kernel key mask.
    S2 = 200
    h_cw2 = jax.random.normal(k_cw, (B, S2, in_features), jnp.float32)
    h_ap2 = jax.random.normal(k_ap, (B, S2, out_features), jnp.float32)
    out2 = jax.block_until_ready(global_attention(h_cw2, h_ap2, weights, seq_tile=128))
    ref2 = global_attention_ref(h_cw2, h_ap2, weights)
    assert out2.shape == (B, S2, in_features)
    assert jnp.allclose(out2, ref2, atol=1e-4, rtol=1e-4), "ragged-S mismatch vs reference"

    print("KERNEL_OK")
</pallas_src>

<mosaic_0001>
module attributes {stable_mosaic.version = 11 : i64} {
  func.func @kernel(%arg0: i32, %arg1: i32, %arg2: i32, %arg3: memref<64x48xf32, #tpu.memory_space<vmem>>, %arg4: memref<1x256x64xf32, #tpu.memory_space<vmem>>, %arg5: memref<1x256x48xf32, #tpu.memory_space<vmem>>, %arg6: memref<1x256x64xf32, #tpu.memory_space<vmem>>, %arg7: memref<1x256x64xf32, #tpu.memory_space<vmem>>, %arg8: memref<256x48xf32, #tpu.memory_space<vmem>>, %arg9: memref<256x1xf32, #tpu.memory_space<vmem>>, %arg10: memref<256x64xf32, #tpu.memory_space<vmem>>) attributes {dimension_semantics = [#tpu.dimension_semantics<parallel>, #tpu.dimension_semantics<parallel>, #tpu.dimension_semantics<arbitrary>], iteration_bounds = array<i64: 2, 1, 1>, scalar_prefetch = 0 : i64, scratch_operands = 3 : i64, tpu.core_type = #tpu.core_type<tc>, window_params = [{pipeline_mode = #tpu.pipeline_mode<synchronous>, transform_indices = @transform_0, window_bounds = array<i64: 64, 48>}, {transform_indices = @transform_1, window_bounds = array<i64: 1, 256, 64>}, {transform_indices = @transform_2, window_bounds = array<i64: 1, 256, 48>}, {transform_indices = @transform_3, window_bounds = array<i64: 1, 256, 64>}, {transform_indices = @transform_4, window_bounds = array<i64: 1, 256, 64>}]} {
    %c0_i32 = arith.constant 0 : i32
    %0 = arith.cmpi eq, %arg2, %c0_i32 : i32
    %1 = arith.extui %0 : i1 to i32
    %c0_i32_0 = arith.constant 0 : i32
    %2 = arith.cmpi ne, %1, %c0_i32_0 : i32
    scf.if %2 {
      %c0_20 = arith.constant 0 : index
      %c0_21 = arith.constant 0 : index
      %c0_22 = arith.constant 0 : index
      %23 = vector.load %arg4[%c0_20, %c0_21, %c0_22] : memref<1x256x64xf32, #tpu.memory_space<vmem>>, vector<1x256x64xf32>
      %24 = vector.shape_cast %23 : vector<1x256x64xf32> to vector<256x64xf32>
      %c0_23 = arith.constant 0 : index
      %c0_24 = arith.constant 0 : index
      %25 = vector.load %arg3[%c0_23, %c0_24] : memref<64x48xf32, #tpu.memory_space<vmem>>, vector<64x48xf32>
      %cst_25 = arith.constant dense<0.000000e+00> : vector<256x48xf32>
      %26 = tpu.matmul %24, %25, %cst_25 {dimension_numbers = #tpu.dot_dimension_numbers<[1], [0], [0], [1], [0, 0, 1, 1], [], []>} : vector<256x64xf32>, vector<64x48xf32>, vector<256x48xf32> -> vector<256x48xf32>
      %c0_26 = arith.constant 0 : index
      %c0_27 = arith.constant 0 : index
      %27 = vector.load %arg8[%c0_26, %c0_27] : memref<256x48xf32, #tpu.memory_space<vmem>>, vector<256x48xf32>
      tpu.vector_store %arg8[%c0_26, %c0_27], %26 {strides = array<i32>} : memref<256x48xf32, #tpu.memory_space<vmem>>, vector<256x48xf32>,
      %cst_28 = arith.constant 0.000000e+00 : f32
      %28 = vector.broadcast %cst_28 : f32 to vector<256x1xf32>
      %c0_29 = arith.constant 0 : index
      %c0_30 = arith.constant 0 : index
      %29 = vector.load %arg9[%c0_29, %c0_30] : memref<256x1xf32, #tpu.memory_space<vmem>>, vector<256x1xf32>
      tpu.vector_store %arg9[%c0_29, %c0_30], %28 {strides = array<i32>} : memref<256x1xf32, #tpu.memory_space<vmem>>, vector<256x1xf32>,
      %cst_31 = arith.constant 0.000000e+00 : f32
      %30 = vector.broadcast %cst_31 : f32 to vector<256x64xf32>
      %c0_32 = arith.constant 0 : index
      %c0_33 = arith.constant 0 : index
      %31 = vector.load %arg10[%c0_32, %c0_33] : memref<256x64xf32, #tpu.memory_space<vmem>>, vector<256x64xf32>
      tpu.vector_store %arg10[%c0_32, %c0_33], %30 {strides = array<i32>} : memref<256x64xf32, #tpu.memory_space<vmem>>, vector<256x64xf32>,
    } else {
    }
    %c0 = arith.constant 0 : index
    %c0_1 = arith.constant 0 : index
    %c0_2 = arith.constant 0 : index
    %3 = vector.load %arg5[%c0, %c0_1, %c0_2] : memref<1x256x48xf32, #tpu.memory_space<vmem>>, vector<1x256x48xf32>
    %4 = vector.shape_cast %3 : vector<1x256x48xf32> to vector<256x48xf32>
    %c0_3 = arith.constant 0 : index
    %c0_4 = arith.constant 0 : index
    %c0_5 = arith.constant 0 : index
    %5 = vector.load %arg6[%c0_3, %c0_4, %c0_5] : memref<1x256x64xf32, #tpu.memory_space<vmem>>, vector<1x256x64xf32>
    %6 = vector.shape_cast %5 : vector<1x256x64xf32> to vector<256x64xf32>
    %c0_6 = arith.constant 0 : index
    %c0_7 = arith.constant 0 : index
    %7 = vector.load %arg8[%c0_6, %c0_7] : memref<256x48xf32, #tpu.memory_space<vmem>>, vector<256x48xf32>
    %cst = arith.constant dense<0.000000e+00> : vector<256x256xf32>
    %8 = tpu.matmul %7, %4, %cst {dimension_numbers = #tpu.dot_dimension_numbers<[1], [1], [0], [0], [0, 0, 1, 0], [], []>} : vector<256x48xf32>, vector<256x48xf32>, vector<256x256xf32> -> vector<256x256xf32>
    %9 = math.tanh %8 : vector<256x256xf32>
    %10 = math.exp %9 : vector<256x256xf32>
    %c0_8 = arith.constant 0 : index
    %c0_9 = arith.constant 0 : index
    %11 = vector.load %arg9[%c0_8, %c0_9] : memref<256x1xf32, #tpu.memory_space<vmem>>, vector<256x1xf32>
    %cst_10 = arith.constant dense<0.000000e+00> : vector<256xf32>
    %12 = vector.multi_reduction <add>, %10, %cst_10 [1] : vector<256x256xf32> to vector<256xf32>
    %13 = vector.shape_cast %12 : vector<256xf32> to vector<256x1xf32>
    %14 = arith.addf %11, %13 : vector<256x1xf32>
    %c0_11 = arith.constant 0 : index
    %c0_12 = arith.constant 0 : index
    %15 = vector.load %arg9[%c0_11, %c0_12] : memref<256x1xf32, #tpu.memory_space<vmem>>, vector<256x1xf32>
    tpu.vector_store %arg9[%c0_11, %c0_12], %14 {strides = array<i32>} : memref<256x1xf32, #tpu.memory_space<vmem>>, vector<256x1xf32>,
    %c0_13 = arith.constant 0 : index
    %c0_14 = arith.constant 0 : index
    %16 = vector.load %arg10[%c0_13, %c0_14] : memref<256x64xf32, #tpu.memory_space<vmem>>, vector<256x64xf32>
    %cst_15 = arith.constant dense<0.000000e+00> : vector<256x64xf32>
    %17 = tpu.matmul %10, %6, %cst_15 {dimension_numbers = #tpu.dot_dimension_numbers<[1], [0], [0], [1], [0, 0, 1, 1], [], []>} : vector<256x256xf32>, vector<256x64xf32>, vector<256x64xf32> -> vector<256x64xf32>
    %18 = arith.addf %16, %17 : vector<256x64xf32>
    %c0_16 = arith.constant 0 : index
    %c0_17 = arith.constant 0 : index
    %19 = vector.load %arg10[%c0_16, %c0_17] : memref<256x64xf32, #tpu.memory_space<vmem>>, vector<256x64xf32>
    tpu.vector_store %arg10[%c0_16, %c0_17], %18 {strides = array<i32>} : memref<256x64xf32, #tpu.memory_space<vmem>>, vector<256x64xf32>,
    %c0_i32_18 = arith.constant 0 : i32
    %20 = arith.cmpi eq, %arg2, %c0_i32_18 : i32
    %21 = arith.extui %20 : i1 to i32
    %c0_i32_19 = arith.constant 0 : i32
    %22 = arith.cmpi ne, %21, %c0_i32_19 : i32
    scf.if %22 {
      %c0_20 = arith.constant 0 : index
      %c0_21 = arith.constant 0 : index
      %23 = vector.load %arg10[%c0_20, %c0_21] : memref<256x64xf32, #tpu.memory_space<vmem>>, vector<256x64xf32>
      %c0_22 = arith.constant 0 : index
      %c0_23 = arith.constant 0 : index
      %24 = vector.load %arg9[%c0_22, %c0_23] : memref<256x1xf32, #tpu.memory_space<vmem>>, vector<256x1xf32>
      %25 = vector.broadcast %24 : vector<256x1xf32> to vector<256x64xf32>
      %26 = arith.divf %23, %25 : vector<256x64xf32>
      %c0_24 = arith.constant 0 : index
      %c0_25 = arith.constant 0 : index
      %c0_26 = arith.constant 0 : index
      %27 = vector.load %arg7[%c0_24, %c0_25, %c0_26] : memref<1x256x64xf32, #tpu.memory_space<vmem>>, vector<1x256x64xf32>
      %28 = vector.shape_cast %27 : vector<1x256x64xf32> to vector<256x64xf32>
      %29 = vector.shape_cast %26 : vector<256x64xf32> to vector<1x256x64xf32>
      tpu.vector_store %arg7[%c0_24, %c0_25, %c0_26], %29 {strides = array<i32>} : memref<1x256x64xf32, #tpu.memory_space<vmem>>, vector<1x256x64xf32>,
    } else {
    }
    return
  }
  func.func @transform_0(%arg0: i32, %arg1: i32, %arg2: i32) -> (i32, i32) {
    %c0_i32 = arith.constant 0 : i32
    %c0_i32_0 = arith.constant 0 : i32
    %c0_i32_1 = arith.constant 0 : i32
    return %c0_i32, %c0_i32_0 : i32, i32
  }
  func.func @transform_1(%arg0: i32, %arg1: i32, %arg2: i32) -> (i32, i32, i32) {
    %c0_i32 = arith.constant 0 : i32
    %c0_i32_0 = arith.constant 0 : i32
    return %arg0, %arg1, %c0_i32 : i32, i32, i32
  }
  func.func @transform_2(%arg0: i32, %arg1: i32, %arg2: i32) -> (i32, i32, i32) {
    %c0_i32 = arith.constant 0 : i32
    %c0_i32_0 = arith.constant 0 : i32
    return %arg0, %arg2, %c0_i32 : i32, i32, i32
  }
  func.func @transform_3(%arg0: i32, %arg1: i32, %arg2: i32) -> (i32, i32, i32) {
    %c0_i32 = arith.constant 0 : i32
    %c0_i32_0 = arith.constant 0 : i32
    return %arg0, %arg2, %c0_i32 : i32, i32, i32
  }
  func.func @transform_4(%arg0: i32, %arg1: i32, %arg2: i32) -> (i32, i32, i32) {
    %c0_i32 = arith.constant 0 : i32
    %c0_i32_0 = arith.constant 0 : i32
    return %arg0, %arg1, %c0_i32 : i32, i32, i32
  }
}

</mosaic_0001>

<llo_original>
// kernel: tpu_custom_call.1
$region0: #{tpu_custom_call.1}
  #allocation0 [shape = 'u32[]', space=smem, size = 0x4, offset = 0x4, fixed_abs, tag = 'smem constant byte address 0x4 - core index']
  #allocation1 [shape = 'u32[144,128]{1,0:T(1,128)}', space=vmem, size = 0x12000, scoped, tag = 'internal scratch']
  #allocation2 [shape = 'f32[256,48]{1,0:T(8,128)}', space=vmem, size = 0x20000, scoped, tag = 'scratch operand']
  #allocation3 [shape = 'f32[256,1]{1,0:T(8,128)}', space=vmem, size = 0x20000, scoped, tag = 'scratch operand']
  #allocation4 [shape = 'f32[256,64]{1,0:T(8,128)}', space=vmem, size = 0x20000, scoped, tag = 'scratch operand']
  %s0 = inlined_call_operand.vmem [shape: f32[64,48], index: 0, kind: input, shape index: {}]
  %s1 = inlined_call_operand.vmem [shape: f32[2,256,64], index: 1, kind: input, shape index: {}]
  %s2 = inlined_call_operand.vmem [shape: f32[2,256,48], index: 2, kind: input, shape index: {}]
  %s3 = inlined_call_operand.vmem [shape: f32[2,256,64], index: 3, kind: input, shape index: {}]
  %s4 = inlined_call_operand.vmem [shape: f32[2,256,64], index: 4, kind: output, shape index: {}]
  %s5 = sld [smem:[#allocation0]]
  $region57: #{tpu_custom_call.1} parent=0
    _
  %s7 = ssub.s32 1, %s5
  %s8 = scalar_select 0, %s7, %s5
  loop: start=0, step=1, limit=4
  $region2: #{tpu_custom_call.1} parent=0 // loop_pre_header
    _
  $region3: #{tpu_custom_call.1} parent=0 // loop_header
    %s10 = sphi 0, %s14
    %p11 = scmp.ge.s32.totalorder %s10, 4
    %s17 = sphi 0, %s36
    %s18 = sphi 0, %s32
    %s19 = sphi 0, %s28
    %s20 = sphi 0, %s17
    %s21 = sphi 0, %s18
    %s22 = sphi 0, %s19
    %s23 = sphi 0, %s20
    %s24 = sphi 0, %s21
    %s25 = sphi 0, %s22
    %s37 = sphi 0, %s37
    %s39 = sphi 0, %s37
    %s40 = sphi 0, %s39
    %s54 = sphi 0, %s40
    %s62 = sphi 0, %s64
    %s65 = sphi 0, %s62
    %s66 = sphi 0, %s65
    %s82 = sphi 0, %s66
    %s90 = sphi 0, %s92
    %s93 = sphi 0, %s90
    %s94 = sphi 0, %s93
    %s110 = sphi 0, %s94
    %s118 = sphi 0, %s120
    %s121 = sphi 0, %s118
    %s122 = sphi 0, %s121
    %s138 = sphi 0, %s122
    %s146 = sphi 0, %s148
    %s149 = sphi 0, %s146
    %s150 = sphi 0, %s149
    %s166 = sphi 0, %s150
  $region4: #{tpu_custom_call.1} parent=0 // loop_header_branch
    %13 = sbr.rel (%p11) target = $region8
  $region5: #{tpu_custom_call.1} parent=0 // loop_body
    %s15 = ssub.s32 %s10, 1
    %s16 = ssub.s32 %s10, 2
    %s26 = sadd.s32 1, %s19
    %p27 = scmp.ge.s32.totalorder %s26, 1
    %s28 = scalar_select %p27, 0, %s26
    %s29 = sadd.s32 1, %s18
    %s30 = scalar_select %p27, %s29, %s18
    %p31 = scmp.ge.s32.totalorder %s30, 1
    %s32 = scalar_select %p31, 0, %s30
    %s33 = sadd.s32 1, %s17
    %s34 = scalar_select %p31, %s33, %s17
    %p35 = scmp.ge.s32.totalorder %s34, 2
    %s36 = scalar_select %p35, 0, %s34
    %s38 = sadd.s32 %s37, 1
    %p41 = scmp.eq.s32.totalorder %s10, 1
    %p42 = scmp.ne.s32.totalorder %s37, %s39
    %p43 = scmp.eq.s32.totalorder %s10, 0
    %p44 = por %p42, %p43
    %p45 = scmp.ne.s32.totalorder %s37, %s39
    %p46 = scmp.eq.s32.totalorder %s15, 1
    %p47 = por %p45, %p46
    %p48 = scmp.ne.s32.totalorder %s39, %s40
    %p49 = scmp.eq.s32.totalorder %s15, 0
    %p50 = por %p48, %p49
    %p51 = scmp.ne.s32.totalorder %s39, %s40
    %p52 = scmp.eq.s32.totalorder %s16, 1
    %p53 = por %p51, %p52
    %p55 = scmp.ne.s32.totalorder %s40, %s54
    %p56 = scmp.eq.s32.totalorder %s16, 0
    %p57 = por %p55, %p56
    %s58 = ssub.s32 %s17, %s36
    %s59 = ssub.s32 %s18, %s32
    %s60 = sor.u32 %s58, %s59
    %p61 = scmp.eq.s32.totalorder %s60, 0
    %s63 = sadd.s32 %s62, 1
    %s64 = scalar_select %p61, %s62, %s63
    %p67 = pneg %p61
    %p68 = scmp.eq.s32.totalorder %s10, 1
    %p69 = por %p67, %p68
    %p70 = scmp.ne.s32.totalorder %s62, %s65
    %p71 = scmp.eq.s32.totalorder %s10, 0
    %p72 = por %p70, %p71
    %p73 = scmp.ne.s32.totalorder %s62, %s65
    %p74 = scmp.eq.s32.totalorder %s15, 1
    %p75 = por %p73, %p74
    %p76 = scmp.ne.s32.totalorder %s65, %s66
    %p77 = scmp.eq.s32.totalorder %s15, 0
    %p78 = por %p76, %p77
    %p79 = scmp.ne.s32.totalorder %s65, %s66
    %p80 = scmp.eq.s32.totalorder %s16, 1
    %p81 = por %p79, %p80
    %p83 = scmp.ne.s32.totalorder %s66, %s82
    %p84 = scmp.eq.s32.totalorder %s16, 0
    %p85 = por %p83, %p84
    %s86 = ssub.s32 %s17, %s36
    %s87 = ssub.s32 %s19, %s28
    %s88 = sor.u32 %s86, %s87
    %p89 = scmp.eq.s32.totalorder %s88, 0
    %s91 = sadd.s32 %s90, 1
    %s92 = scalar_select %p89, %s90, %s91
    %p95 = pneg %p89
    %p96 = scmp.eq.s32.totalorder %s10, 1
    %p97 = por %p95, %p96
    %p98 = scmp.ne.s32.totalorder %s90, %s93
    %p99 = scmp.eq.s32.totalorder %s10, 0
    %p100 = por %p98, %p99
    %p101 = scmp.ne.s32.totalorder %s90, %s93
    %p102 = scmp.eq.s32.totalorder %s15, 1
    %p103 = por %p101, %p102
    %p104 = scmp.ne.s32.totalorder %s93, %s94
    %p105 = scmp.eq.s32.totalorder %s15, 0
    %p106 = por %p104, %p105
    %p107 = scmp.ne.s32.totalorder %s93, %s94
    %p108 = scmp.eq.s32.totalorder %s16, 1
    %p109 = por %p107, %p108
    %p111 = scmp.ne.s32.totalorder %s94, %s110
    %p112 = scmp.eq.s32.totalorder %s16, 0
    %p113 = por %p111, %p112
    %s114 = ssub.s32 %s17, %s36
    %s115 = ssub.s32 %s19, %s28
    %s116 = sor.u32 %s114, %s115
    %p117 = scmp.eq.s32.totalorder %s116, 0
    %s119 = sadd.s32 %s118, 1
    %s120 = scalar_select %p117, %s118, %s119
    %p123 = pneg %p117
    %p124 = scmp.eq.s32.totalorder %s10, 1
    %p125 = por %p123, %p124
    %p126 = scmp.ne.s32.totalorder %s118, %s121
    %p127 = scmp.eq.s32.totalorder %s10, 0
    %p128 = por %p126, %p127
    %p129 = scmp.ne.s32.totalorder %s118, %s121
    %p130 = scmp.eq.s32.totalorder %s15, 1
    %p131 = por %p129, %p130
    %p132 = scmp.ne.s32.totalorder %s121, %s122
    %p133 = scmp.eq.s32.totalorder %s15, 0
    %p134 = por %p132, %p133
    %p135 = scmp.ne.s32.totalorder %s121, %s122
    %p136 = scmp.eq.s32.totalorder %s16, 1
    %p137 = por %p135, %p136
    %p139 = scmp.ne.s32.totalorder %s122, %s138
    %p140 = scmp.eq.s32.totalorder %s16, 0
    %p141 = por %p139, %p140
    %s142 = ssub.s32 %s17, %s36
    %s143 = ssub.s32 %s18, %s32
    %s144 = sor.u32 %s142, %s143
    %p145 = scmp.eq.s32.totalorder %s144, 0
    %s147 = sadd.s32 %s146, 1
    %s148 = scalar_select %p145, %s146, %s147
    %p151 = pneg %p145
    %p152 = scmp.eq.s32.totalorder %s10, 1
    %p153 = por %p151, %p152
    %p154 = scmp.ne.s32.totalorder %s146, %s149
    %p155 = scmp.eq.s32.totalorder %s10, 0
    %p156 = por %p154, %p155
    %p157 = scmp.ne.s32.totalorder %s146, %s149
    %p158 = scmp.eq.s32.totalorder %s15, 1
    %p159 = por %p157, %p158
    %p160 = scmp.ne.s32.totalorder %s149, %s150
    %p161 = scmp.eq.s32.totalorder %s15, 0
    %p162 = por %p160, %p161
    %p163 = scmp.ne.s32.totalorder %s149, %s150
    %p164 = scmp.eq.s32.totalorder %s16, 1
    %p165 = por %p163, %p164
    %p167 = scmp.ne.s32.totalorder %s150, %s166
    %p168 = scmp.eq.s32.totalorder %s16, 0
    %p169 = por %p167, %p168
    %p170 = scmp.le.s32.totalorder 1, %s10
    %p171 = scmp.lt.s32.totalorder %s10, 3
    %p172 = pnand %p170, %p171
    %p173 = pneg %p172
    // Predicated region
    $region9: #{tpu_custom_call.1} parent=5 // pred_check
      _
    $region10: #{tpu_custom_call.1} parent=5 // pred_check_branch
      %175 = sbr.rel (%p172) target = $region12
    $region11: #{tpu_custom_call.1} parent=5 // pred_region
      %s176 = ssub.s32 %s10, 1
      // Predicated region
      $region13: #{tpu_custom_call.1} parent=11 // pred_check
        %p177 = pneg %p50
      $region14: #{tpu_custom_call.1} parent=11 // pred_check_branch
        %179 = sbr.rel (%p177) target = $region16
      $region15: #{tpu_custom_call.1} parent=11 // pred_region
        _
      $region16: #{tpu_custom_call.1} parent=11 // pred_fallthru
        _
    $region12: #{tpu_custom_call.1} parent=5 // pred_fallthru
      _
    %p180 = scmp.lt.s32.totalorder %s10, 2
    // Predicated region
    $region17: #{tpu_custom_call.1} parent=5 // pred_check
      %p181 = pneg %p180
    $region18: #{tpu_custom_call.1} parent=5 // pred_check_branch
      %183 = sbr.rel (%p181) target = $region20
    $region19: #{tpu_custom_call.1} parent=5 // pred_region
      // Predicated region
      $region21: #{tpu_custom_call.1} parent=19 // pred_check
        %p184 = pneg %p72
      $region22: #{tpu_custom_call.1} parent=19 // pred_check_branch
        %186 = sbr.rel (%p184) target = $region24
      $region23: #{tpu_custom_call.1} parent=19 // pred_region
        %s187 = smul.u32 32, %s18
        %p188 = scmp.lt.s32.totalorder %s17, 1
        %s189 = scalar_select %p188, %s17, 1
        %p190 = scmp.lt.s32.totalorder %s187, 31
        %s191 = scalar_select %p190, %s187, 31
        %s192 = smul.addr %s189, 32
        %s193 = sadd.s32 %s191, %s192
        %s194 = smul.addr %s193, 8
        %s195 = scalar_lea.vmem %s1, %s194
        %s196 = smul.u32 32, %s18
      $region24: #{tpu_custom_call.1} parent=19 // pred_fallthru
        _
      // Predicated region
      $region25: #{tpu_custom_call.1} parent=19 // pred_check
        %p197 = pneg %p100
      $region26: #{tpu_custom_call.1} parent=19 // pred_check_branch
        %199 = sbr.rel (%p197) target = $region28
      $region27: #{tpu_custom_call.1} parent=19 // pred_region
        %s200 = smul.u32 32, %s19
        %p201 = scmp.lt.s32.totalorder %s17, 1
        %s202 = scalar_select %p201, %s17, 1
        %p203 = scmp.lt.s32.totalorder %s200, 31
        %s204 = scalar_select %p203, %s200, 31
        %s205 = smul.addr %s202, 32
        %s206 = sadd.s32 %s204, %s205
        %s207 = smul.addr %s206, 8
        %s208 = scalar_lea.vmem %s2, %s207
        %s209 = smul.u32 32, %s19
      $region28: #{tpu_custom_call.1} parent=19 // pred_fallthru
        _
      // Predicated region
      $region29: #{tpu_custom_call.1} parent=19 // pred_check
        %p210 = pneg %p128
      $region30: #{tpu_custom_call.1} parent=19 // pred_check_branch
        %212 = sbr.rel (%p210) target = $region32
      $region31: #{tpu_custom_call.1} parent=19 // pred_region
        %s213 = smul.u32 32, %s19
        %p214 = scmp.lt.s32.totalorder %s17, 1
        %s215 = scalar_select %p214, %s17, 1
        %p216 = scmp.lt.s32.totalorder %s213, 31
        %s217 = scalar_select %p216, %s213, 31
        %s218 = smul.addr %s215, 32
        %s219 = sadd.s32 %s217, %s218
        %s220 = smul.addr %s219, 8
        %s221 = scalar_lea.vmem %s3, %s220
        %s222 = smul.u32 32, %s19
      $region32: #{tpu_custom_call.1} parent=19 // pred_fallthru
        _
    $region20: #{tpu_custom_call.1} parent=5 // pred_fallthru
      _
    %p223 = scmp.le.s32.totalorder 1, %s10
    %p224 = scmp.lt.s32.totalorder %s10, 3
    %p225 = pnand %p223, %p224
    %p226 = pneg %p225
    // Predicated region
    $region33: #{tpu_custom_call.1} parent=5 // pred_check
      _
    $region34: #{tpu_custom_call.1} parent=5 // pred_check_branch
      %228 = sbr.rel (%p225) target = $region36
    $region35: #{tpu_custom_call.1} parent=5 // pred_region
      %s229 = ssub.s32 %s10, 1
      %p230 = pneg %p50
      %p231 = pneg %p47
      %s232 = smul.u32 32, %s21
      %p233 = scmp.lt.s32.totalorder %s20, 1
      %s234 = scalar_select %p233, %s20, 1
      %p235 = scmp.lt.s32.totalorder %s232, 31
      %s236 = scalar_select %p235, %s232, 31
      %s237 = smul.addr %s234, 32
      %s238 = sadd.s32 %s236, %s237
      %s239 = smul.addr %s238, 8
      %s240 = scalar_lea.vmem %s1, %s239
      %p241 = pneg %p78
      %p242 = pneg %p75
      %s243 = smul.u32 32, %s22
      %p244 = scmp.lt.s32.totalorder %s20, 1
      %s245 = scalar_select %p244, %s20, 1
      %p246 = scmp.lt.s32.totalorder %s243, 31
      %s247 = scalar_select %p246, %s243, 31
      %s248 = smul.addr %s245, 32
      %s249 = sadd.s32 %s247, %s248
      %s250 = smul.addr %s249, 8
      %s251 = scalar_lea.vmem %s2, %s250
      %p252 = pneg %p106
      %p253 = pneg %p103
      %s254 = smul.u32 32, %s22
      %p255 = scmp.lt.s32.totalorder %s20, 1
      %s256 = scalar_select %p255, %s20, 1
      %p257 = scmp.lt.s32.totalorder %s254, 31
      %s258 = scalar_select %p257, %s254, 31
      %s259 = smul.addr %s256, 32
      %s260 = sadd.s32 %s258, %s259
      %s261 = smul.addr %s260, 8
      %s262 = scalar_lea.vmem %s3, %s261
      %p263 = pneg %p134
      %p264 = pneg %p131
      %p265 = pneg %p162
      %p266 = pneg %p159
      %s267 = smul.u32 32, %s21
      %p268 = scmp.lt.s32.totalorder %s20, 1
      %s269 = scalar_select %p268, %s20, 1
      %p270 = scmp.lt.s32.totalorder %s267, 31
      %s271 = scalar_select %p270, %s267, 31
      %s272 = smul.addr %s269, 32
      %s273 = sadd.s32 %s271, %s272
      %s274 = smul.addr %s273, 8
      %s275 = scalar_lea.vmem %s4, %s274
      %s276 = smul.u32 32, %s21
      %p277 = scmp.lt.s32.totalorder %s20, 1
      %s278 = scalar_select %p277, %s20, 1
      %p279 = scmp.lt.s32.totalorder %s276, 31
      %s280 = scalar_select %p279, %s276, 31
      %s281 = smul.addr %s278, 32
      %s282 = sadd.s32 %s280, %s281
      %s283 = smul.addr %s282, 8
      %s284 = scalar_lea.vmem %s1, %s283
      %s285 = smul.u32 32, %s21
      %s286 = smul.u32 32, %s22
      %p287 = scmp.lt.s32.totalorder %s20, 1
      %s288 = scalar_select %p287, %s20, 1
      %p289 = scmp.lt.s32.totalorder %s286, 31
      %s290 = scalar_select %p289, %s286, 31
      %s291 = smul.addr %s288, 32
      %s292 = sadd.s32 %s290, %s291
      %s293 = smul.addr %s292, 8
      %s294 = scalar_lea.vmem %s2, %s293
      %s295 = smul.u32 32, %s22
      %s296 = smul.u32 32, %s22
      %p297 = scmp.lt.s32.totalorder %s20, 1
      %s298 = scalar_select %p297, %s20, 1
      %p299 = scmp.lt.s32.totalorder %s296, 31
      %s300 = scalar_select %p299, %s296, 31
      %s301 = smul.addr %s298, 32
      %s302 = sadd.s32 %s300, %s301
      %s303 = smul.addr %s302, 8
      %s304 = scalar_lea.vmem %s3, %s303
      %s305 = smul.u32 32, %s22
      %s306 = smul.u32 32, %s21
      %p307 = scmp.lt.s32.totalorder %s20, 1
      %s308 = scalar_select %p307, %s20, 1
      %p309 = scmp.lt.s32.totalorder %s306, 31
      %s310 = scalar_select %p309, %s306, 31
      %s311 = smul.addr %s308, 32
      %s312 = sadd.s32 %s310, %s311
      %s313 = smul.addr %s312, 8
      %s314 = scalar_lea.vmem %s4, %s313
      %s315 = smul.u32 32, %s21
      %p316 = scmp.eq.s32.totalorder %s22, 0
      // Predicated region
      $region37: #{tpu_custom_call.1} parent=35 // pred_check
        %p317 = pneg %p316
      $region38: #{tpu_custom_call.1} parent=35 // pred_check_branch
        %319 = sbr.rel (%p317) target = $region40
      $region39: #{tpu_custom_call.1} parent=35 // pred_region
        %v320 = vld [vmem:[%s284] sm:$0xff]
        %v321 = vld [vmem:[%s284 + $0x8] sm:$0xff]
        %v322 = vld [vmem:[%s284 + $0x10] sm:$0xff]
        %v323 = vld [vmem:[%s284 + $0x18] sm:$0xff]
        %v324 = vld [vmem:[%s284 + $0x20] sm:$0xff]
        %v325 = vld [vmem:[%s284 + $0x28] sm:$0xff]
        %v326 = vld [vmem:[%s284 + $0x30] sm:$0xff]
        %v327 = vld [vmem:[%s284 + $0x38] sm:$0xff]
        %v328 = vld [vmem:[%s284 + $0x40] sm:$0xff]
        %v329 = vld [vmem:[%s284 + $0x48] sm:$0xff]
        %v330 = vld [vmem:[%s284 + $0x50] sm:$0xff]
        %v331 = vld [vmem:[%s284 + $0x58] sm:$0xff]
        %v332 = vld [vmem:[%s284 + $0x60] sm:$0xff]
        %v333 = vld [vmem:[%s284 + $0x68] sm:$0xff]
        %v334 = vld [vmem:[%s284 + $0x70] sm:$0xff]
        %v335 = vld [vmem:[%s284 + $0x78] sm:$0xff]
        %v336 = vld [vmem:[%s284 + $0x80] sm:$0xff]
        %v337 = vld [vmem:[%s284 + $0x88] sm:$0xff]
        %v338 = vld [vmem:[%s284 + $0x90] sm:$0xff]
        %v339 = vld [vmem:[%s284 + $0x98] sm:$0xff]
        %v340 = vld [vmem:[%s284 + $0xa0] sm:$0xff]
        %v341 = vld [vmem:[%s284 + $0xa8] sm:$0xff]
        %v342 = vld [vmem:[%s284 + $0xb0] sm:$0xff]
        %v343 = vld [vmem:[%s284 + $0xb8] sm:$0xff]
        %v344 = vld [vmem:[%s284 + $0xc0] sm:$0xff]
        %v345 = vld [vmem:[%s284 + $0xc8] sm:$0xff]
        %v346 = vld [vmem:[%s284 + $0xd0] sm:$0xff]
        %v347 = vld [vmem:[%s284 + $0xd8] sm:$0xff]
        %v348 = vld [vmem:[%s284 + $0xe0] sm:$0xff]
        %v349 = vld [vmem:[%s284 + $0xe8] sm:$0xff]
        %v350 = vld [vmem:[%s284 + $0xf0] sm:$0xff]
        %v351 = vld [vmem:[%s284 + $0xf8] sm:$0xff]
        %v352 = vld [vmem:[%s0] sm:$0xff]
        %v353 = vld [vmem:[%s0 + $0x8] sm:$0xff]
        %v354 = vld [vmem:[%s0 + $0x10] sm:$0xff]
        %v355 = vld [vmem:[%s0 + $0x18] sm:$0xff]
        %v356 = vld [vmem:[%s0 + $0x20] sm:$0xff]
        %v357 = vld [vmem:[%s0 + $0x28] sm:$0xff]
        %v358 = vld [vmem:[%s0 + $0x30] sm:$0xff]
        %v359 = vld [vmem:[%s0 + $0x38] sm:$0xff]
        %vm360 = vcmask 523264
        %v362 = vsel %vm360, %v320, 0
        %v365 = vsel %vm360, %v321, 0
        %v368 = vsel %vm360, %v322, 0
        %v371 = vsel %vm360, %v323, 0
        %v374 = vsel %vm360, %v324, 0
        %v377 = vsel %vm360, %v325, 0
        %v380 = vsel %vm360, %v326, 0
        %v383 = vsel %vm360, %v327, 0
        %v386 = vsel %vm360, %v328, 0
        %v389 = vsel %vm360, %v329, 0
        %v392 = vsel %vm360, %v330, 0
        %v395 = vsel %vm360, %v331, 0
        %v398 = vsel %vm360, %v332, 0
        %v401 = vsel %vm360, %v333, 0
        %v404 = vsel %vm360, %v334, 0
        %v407 = vsel %vm360, %v335, 0
        %v410 = vsel %vm360, %v336, 0
        %v413 = vsel %vm360, %v337, 0
        %v416 = vsel %vm360, %v338, 0
        %v419 = vsel %vm360, %v339, 0
        %v422 = vsel %vm360, %v340, 0
        %v425 = vsel %vm360, %v341, 0
        %v428 = vsel %vm360, %v342, 0
        %v431 = vsel %vm360, %v343, 0
        %v434 = vsel %vm360, %v344, 0
        %v437 = vsel %vm360, %v345, 0
        %v440 = vsel %vm360, %v346, 0
        %v443 = vsel %vm360, %v347, 0
        %v446 = vsel %vm360, %v348, 0
        %v449 = vsel %vm360, %v349, 0
        %v452 = vsel %vm360, %v350, 0
        %v455 = vsel %vm360, %v351, 0
        %457 = vmatprep.subr.mxu0 0.0
        %458 = vmatpush1.msra.mxu0 %v352
        %459 = vmatprep.subr.mxu0 0.0
        %460 = vmatpush1.msra.mxu0 %v353
        %461 = vmatprep.subr.mxu0 0.0
        %462 = vmatpush1.msra.mxu0 %v354
        %463 = vmatprep.subr.mxu0 0.0
        %464 = vmatpush1.msra.mxu0 %v355
        %465 = vmatprep.subr.mxu0 0.0
        %466 = vmatpush1.msra.mxu0 %v356
        %467 = vmatprep.subr.mxu0 0.0
        %468 = vmatpush1.msra.mxu0 %v357
        %469 = vmatprep.subr.mxu0 0.0
        %470 = vmatpush1.msra.mxu0 %v358
        %471 = vmatprep.subr.mxu0 0.0
        %472 = vmatpush1.msra.mxu0 %v359
        %473 = vmatprep.subr.mxu0 0.0
        %474 = vmatpush1.msra.mxu0 0.0
        %475 = vmatprep.subr.mxu0 0.0
        %476 = vmatpush1.msra.mxu0 0.0
        %477 = vmatprep.subr.mxu0 0.0
        %478 = vmatpush1.msra.mxu0 0.0
        %479 = vmatprep.subr.mxu0 0.0
        %480 = vmatpush1.msra.mxu0 0.0
        %481 = vmatprep.subr.mxu0 0.0
        %482 = vmatpush1.msra.mxu0 0.0
        %483 = vmatprep.subr.mxu0 0.0
        %484 = vmatpush1.msra.mxu0 0.0
        %485 = vmatprep.subr.mxu0 0.0
        %486 = vmatpush1.msra.mxu0 0.0
        %487 = vmatprep.subr.mxu0 0.0
        %488 = vmatpush1.msra.mxu0 0.0
        %489 = vmatprep.subr.mxu0 0.0
        %490 = vmatpush1.msra.mxu0 0.0
        %491 = vmatprep.subr.mxu0 0.0
        %492 = vmatpush1.msra.mxu0 0.0
        %493 = vmatprep.subr.mxu0 0.0
        %494 = vmatpush1.msra.mxu0 0.0
        %495 = vmatprep.subr.mxu0 0.0
        %496 = vmatpush1.msra.mxu0 0.0
        %497 = vmatprep.subr.mxu0 0.0
        %498 = vmatpush1.msra.mxu0 0.0
        %499 = vmatprep.subr.mxu0 0.0
        %500 = vmatpush1.msra.mxu0 0.0
        %501 = vmatprep.subr.mxu0 0.0
        %502 = vmatpush1.msra.mxu0 0.0
        %503 = vmatprep.subr.mxu0 0.0
        %504 = vmatpush1.msra.mxu0 0.0
        %505 = vmatprep.subr.mxu0 0.0
        %506 = vmatpush1.msra.mxu0 0.0
        %507 = vmatprep.subr.mxu0 0.0
        %508 = vmatpush1.msra.mxu0 0.0
        %509 = vmatprep.subr.mxu0 0.0
        %510 = vmatpush1.msra.mxu0 0.0
        %511 = vmatprep.subr.mxu0 0.0
        %512 = vmatpush1.msra.mxu0 0.0
        %513 = vmatprep.subr.mxu0 0.0
        %514 = vmatpush1.msra.mxu0 0.0
        %515 = vmatprep.subr.mxu0 0.0
        %516 = vmatpush1.msra.mxu0 0.0
        %517 = vmatprep.subr.mxu0 0.0
        %518 = vmatpush1.msra.mxu0 0.0
        %519 = vmatprep.subr.mxu0 0.0
        %520 = vmatpush1.msra.mxu0 0.0
        %521 = vmatprep.mubr.f32.mxu0 0.0
        %522 = vmatmul.mubr.f32.gmra.mrb[0].mxu0 %v362
        %v523 = vpop.f32.mrb[0].mxu0
        %v524 = vadd.f32 0.0, %v523
        %v525 = vpop.f32.mrb[0].mxu0
        %526 = vmatprep.mubr.f32.mxu0 0.0
        %527 = vmatmul.mubr.f32.gmra.mrb[0].mxu0 %v365
        %v528 = vpop.f32.mrb[0].mxu0
        %v529 = vadd.f32 0.0, %v528
        %v530 = vpop.f32.mrb[0].mxu0
        %531 = vmatprep.mubr.f32.mxu0 0.0
        %532 = vmatmul.mubr.f32.gmra.mrb[0].mxu0 %v368
        %v533 = vpop.f32.mrb[0].mxu0
        %v534 = vadd.f32 0.0, %v533
        %v535 = vpop.f32.mrb[0].mxu0
        %536 = vmatprep.mubr.f32.mxu0 0.0
        %537 = vmatmul.mubr.f32.gmra.mrb[0].mxu0 %v371
        %v538 = vpop.f32.mrb[0].mxu0
        %v539 = vadd.f32 0.0, %v538
        %v540 = vpop.f32.mrb[0].mxu0
        %541 = vmatprep.mubr.f32.mxu0 0.0
        %542 = vmatmul.mubr.f32.gmra.mrb[0].mxu0 %v374
        %v543 = vpop.f32.mrb[0].mxu0
        %v544 = vadd.f32 0.0, %v543
        %v545 = vpop.f32.mrb[0].mxu0
        %546 = vmatprep.mubr.f32.mxu0 0.0
        %547 = vmatmul.mubr.f32.gmra.mrb[0].mxu0 %v377
        %v548 = vpop.f32.mrb[0].mxu0
        %v549 = vadd.f32 0.0, %v548
        %v550 = vpop.f32.mrb[0].mxu0
        %551 = vmatprep.mubr.f32.mxu0 0.0
        %552 = vmatmul.mubr.f32.gmra.mrb[0].mxu0 %v380
        %v553 = vpop.f32.mrb[0].mxu0
        %v554 = vadd.f32 0.0, %v553
        %v555 = vpop.f32.mrb[0].mxu0
        %556 = vmatprep.mubr.f32.mxu0 0.0
        %557 = vmatmul.mubr.f32.gmra.mrb[0].mxu0 %v383
        %v558 = vpop.f32.mrb[0].mxu0
        %v559 = vadd.f32 0.0, %v558
        %v560 = vpop.f32.mrb[0].mxu0
        %561 = vmatprep.mubr.f32.mxu0 0.0
        %562 = vmatmul.mubr.f32.gmra.mrb[0].mxu0 %v386
        %v563 = vpop.f32.mrb[0].mxu0
        %v564 = vadd.f32 0.0, %v563
        %v565 = vpop.f32.mrb[0].mxu0
        %566 = vmatprep.mubr.f32.mxu0 0.0
        %567 = vmatmul.mubr.f32.gmra.mrb[0].mxu0 %v389
        %v568 = vpop.f32.mrb[0].mxu0
        %v569 = vadd.f32 0.0, %v568
        %v570 = vpop.f32.mrb[0].mxu0
        %571 = vmatprep.mubr.f32.mxu0 0.0
        %572 = vmatmul.mubr.f32.gmra.mrb[0].mxu0 %v392
        %v573 = vpop.f32.mrb[0].mxu0
        %v574 = vadd.f32 0.0, %v573
        %v575 = vpop.f32.mrb[0].mxu0
        %576 = vmatprep.mubr.f32.mxu0 0.0
        %577 = vmatmul.mubr.f32.gmra.mrb[0].mxu0 %v395
        %v578 = vpop.f32.mrb[0].mxu0
        %v579 = vadd.f32 0.0, %v578
        %v580 = vpop.f32.mrb[0].mxu0
        %581 = vmatprep.mubr.f32.mxu0 0.0
        %582 = vmatmul.mubr.f32.gmra.mrb[0].mxu0 %v398
        %v583 = vpop.f32.mrb[0].mxu0
        %v584 = vadd.f32 0.0, %v583
        %v585 = vpop.f32.mrb[0].mxu0
        %586 = vmatprep.mubr.f32.mxu0 0.0
        %587 = vmatmul.mubr.f32.gmra.mrb[0].mxu0 %v401
        %v588 = vpop.f32.mrb[0].mxu0
        %v589 = vadd.f32 0.0, %v588
        %v590 = vpop.f32.mrb[0].mxu0
        %591 = vmatprep.mubr.f32.mxu0 0.0
        %592 = vmatmul.mubr.f32.gmra.mrb[0].mxu0 %v404
        %v593 = vpop.f32.mrb[0].mxu0
        %v594 = vadd.f32 0.0, %v593
        %v595 = vpop.f32.mrb[0].mxu0
        %596 = vmatprep.mubr.f32.mxu0 0.0
        %597 = vmatmul.mubr.f32.gmra.mrb[0].mxu0 %v407
        %v598 = vpop.f32.mrb[0].mxu0
        %v599 = vadd.f32 0.0, %v598
        %v600 = vpop.f32.mrb[0].mxu0
        %601 = vmatprep.mubr.f32.mxu0 0.0
        %602 = vmatmul.mubr.f32.gmra.mrb[0].mxu0 %v410
        %v603 = vpop.f32.mrb[0].mxu0
        %v604 = vadd.f32 0.0, %v603
        %v605 = vpop.f32.mrb[0].mxu0
        %606 = vmatprep.mubr.f32.mxu0 0.0
        %607 = vmatmul.mubr.f32.gmra.mrb[0].mxu0 %v413
        %v608 = vpop.f32.mrb[0].mxu0
        %v609 = vadd.f32 0.0, %v608
        %v610 = vpop.f32.mrb[0].mxu0
        %611 = vmatprep.mubr.f32.mxu0 0.0
        %612 = vmatmul.mubr.f32.gmra.mrb[0].mxu0 %v416
        %v613 = vpop.f32.mrb[0].mxu0
        %v614 = vadd.f32 0.0, %v613
        %v615 = vpop.f32.mrb[0].mxu0
        %616 = vmatprep.mubr.f32.mxu0 0.0
        %617 = vmatmul.mubr.f32.gmra.mrb[0].mxu0 %v419
        %v618 = vpop.f32.mrb[0].mxu0
        %v619 = vadd.f32 0.0, %v618
        %v620 = vpop.f32.mrb[0].mxu0
        %621 = vmatprep.mubr.f32.mxu0 0.0
        %622 = vmatmul.mubr.f32.gmra.mrb[0].mxu0 %v422
        %v623 = vpop.f32.mrb[0].mxu0
        %v624 = vadd.f32 0.0, %v623
        %v625 = vpop.f32.mrb[0].mxu0
        %626 = vmatprep.mubr.f32.mxu0 0.0
        %627 = vmatmul.mubr.f32.gmra.mrb[0].mxu0 %v425
        %v628 = vpop.f32.mrb[0].mxu0
        %v629 = vadd.f32 0.0, %v628
        %v630 = vpop.f32.mrb[0].mxu0
        %631 = vmatprep.mubr.f32.mxu0 0.0
        %632 = vmatmul.mubr.f32.gmra.mrb[0].mxu0 %v428
        %v633 = vpop.f32.mrb[0].mxu0
        %v634 = vadd.f32 0.0, %v633
        %v635 = vpop.f32.mrb[0].mxu0
        %636 = vmatprep.mubr.f32.mxu0 0.0
        %637 = vmatmul.mubr.f32.gmra.mrb[0].mxu0 %v431
        %v638 = vpop.f32.mrb[0].mxu0
        %v639 = vadd.f32 0.0, %v638
        %v640 = vpop.f32.mrb[0].mxu0
        %641 = vmatprep.mubr.f32.mxu0 0.0
        %642 = vmatmul.mubr.f32.gmra.mrb[0].mxu0 %v434
        %v643 = vpop.f32.mrb[0].mxu0
        %v644 = vadd.f32 0.0, %v643
        %v645 = vpop.f32.mrb[0].mxu0
        %646 = vmatprep.mubr.f32.mxu0 0.0
        %647 = vmatmul.mubr.f32.gmra.mrb[0].mxu0 %v437
        %v648 = vpop.f32.mrb[0].mxu0
        %v649 = vadd.f32 0.0, %v648
        %v650 = vpop.f32.mrb[0].mxu0
        %651 = vmatprep.mubr.f32.mxu0 0.0
        %652 = vmatmul.mubr.f32.gmra.mrb[0].mxu0 %v440
        %v653 = vpop.f32.mrb[0].mxu0
        %v654 = vadd.f32 0.0, %v653
        %v655 = vpop.f32.mrb[0].mxu0
        %656 = vmatprep.mubr.f32.mxu0 0.0
        %657 = vmatmul.mubr.f32.gmra.mrb[0].mxu0 %v443
        %v658 = vpop.f32.mrb[0].mxu0
        %v659 = vadd.f32 0.0, %v658
        %v660 = vpop.f32.mrb[0].mxu0
        %661 = vmatprep.mubr.f32.mxu0 0.0
        %662 = vmatmul.mubr.f32.gmra.mrb[0].mxu0 %v446
        %v663 = vpop.f32.mrb[0].mxu0
        %v664 = vadd.f32 0.0, %v663
        %v665 = vpop.f32.mrb[0].mxu0
        %666 = vmatprep.mubr.f32.mxu0 0.0
        %667 = vmatmul.mubr.f32.gmra.mrb[0].mxu0 %v449
        %v668 = vpop.f32.mrb[0].mxu0
        %v669 = vadd.f32 0.0, %v668
        %v670 = vpop.f32.mrb[0].mxu0
        %671 = vmatprep.mubr.f32.mxu0 0.0
        %672 = vmatmul.mubr.f32.gmra.mrb[0].mxu0 %v452
        %v673 = vpop.f32.mrb[0].mxu0
        %v674 = vadd.f32 0.0, %v673
        %v675 = vpop.f32.mrb[0].mxu0
        %676 = vmatprep.mubr.f32.mxu0 0.0
        %677 = vmatmul.mubr.f32.gmra.mrb[0].mxu0 %v455
        %v678 = vpop.f32.mrb[0].mxu0
        %v679 = vadd.f32 0.0, %v678
        %v680 = vpop.f32.mrb[0].mxu0
        %681 = vdwg.mxu0
        %vm682 = vcmask 392192
        %683 = vst.msk [vmem:[#allocation2] sm:$0xff] %vm682, %v524
        %684 = vst.msk [vmem:[#allocation2 + $0x8] sm:$0xff] %vm682, %v529
        %685 = vst.msk [vmem:[#allocation2 + $0x10] sm:$0xff] %vm682, %v534
        %686 = vst.msk [vmem:[#allocation2 + $0x18] sm:$0xff] %vm682, %v539
        %687 = vst.msk [vmem:[#allocation2 + $0x20] sm:$0xff] %vm682, %v544
        %688 = vst.msk [vmem:[#allocation2 + $0x28] sm:$0xff] %vm682, %v549
        %689 = vst.msk [vmem:[#allocation2 + $0x30] sm:$0xff] %vm682, %v554
        %690 = vst.msk [vmem:[#allocation2 + $0x38] sm:$0xff] %vm682, %v559
        %691 = vst.msk [vmem:[#allocation2 + $0x40] sm:$0xff] %vm682, %v564
        %692 = vst.msk [vmem:[#allocation2 + $0x48] sm:$0xff] %vm682, %v569
        %693 = vst.msk [vmem:[#allocation2 + $0x50] sm:$0xff] %vm682, %v574
        %694 = vst.msk [vmem:[#allocation2 + $0x58] sm:$0xff] %vm682, %v579
        %695 = vst.msk [vmem:[#allocation2 + $0x60] sm:$0xff] %vm682, %v584
        %696 = vst.msk [vmem:[#allocation2 + $0x68] sm:$0xff] %vm682, %v589
        %697 = vst.msk [vmem:[#allocation2 + $0x70] sm:$0xff] %vm682, %v594
        %698 = vst.msk [vmem:[#allocation2 + $0x78] sm:$0xff] %vm682, %v599
        %699 = vst.msk [vmem:[#allocation2 + $0x80] sm:$0xff] %vm682, %v604
        %700 = vst.msk [vmem:[#allocation2 + $0x88] sm:$0xff] %vm682, %v609
        %701 = vst.msk [vmem:[#allocation2 + $0x90] sm:$0xff] %vm682, %v614
        %702 = vst.msk [vmem:[#allocation2 + $0x98] sm:$0xff] %vm682, %v619
        %703 = vst.msk [vmem:[#allocation2 + $0xa0] sm:$0xff] %vm682, %v624
        %704 = vst.msk [vmem:[#allocation2 + $0xa8] sm:$0xff] %vm682, %v629
        %705 = vst.msk [vmem:[#allocation2 + $0xb0] sm:$0xff] %vm682, %v634
        %706 = vst.msk [vmem:[#allocation2 + $0xb8] sm:$0xff] %vm682, %v639
        %707 = vst.msk [vmem:[#allocation2 + $0xc0] sm:$0xff] %vm682, %v644
        %708 = vst.msk [vmem:[#allocation2 + $0xc8] sm:$0xff] %vm682, %v649
        %709 = vst.msk [vmem:[#allocation2 + $0xd0] sm:$0xff] %vm682, %v654
        %710 = vst.msk [vmem:[#allocation2 + $0xd8] sm:$0xff] %vm682, %v659
        %711 = vst.msk [vmem:[#allocation2 + $0xe0] sm:$0xff] %vm682, %v664
        %712 = vst.msk [vmem:[#allocation2 + $0xe8] sm:$0xff] %vm682, %v669
        %713 = vst.msk [vmem:[#allocation2 + $0xf0] sm:$0xff] %vm682, %v674
        %714 = vst.msk [vmem:[#allocation2 + $0xf8] sm:$0xff] %vm682, %v679
        %vm715 = vcmask 7168
        %716 = vst.msk [vmem:[#allocation3] sm:$0xff] %vm715, 0.0
        %717 = vst.msk [vmem:[#allocation3 + $0x8] sm:$0xff] %vm715, 0.0
        %718 = vst.msk [vmem:[#allocation3 + $0x10] sm:$0xff] %vm715, 0.0
        %719 = vst.msk [vmem:[#allocation3 + $0x18] sm:$0xff] %vm715, 0.0
        %720 = vst.msk [vmem:[#allocation3 + $0x20] sm:$0xff] %vm715, 0.0
        %721 = vst.msk [vmem:[#allocation3 + $0x28] sm:$0xff] %vm715, 0.0
        %722 = vst.msk [vmem:[#allocation3 + $0x30] sm:$0xff] %vm715, 0.0
        %723 = vst.msk [vmem:[#allocation3 + $0x38] sm:$0xff] %vm715, 0.0
        %724 = vst.msk [vmem:[#allocation3 + $0x40] sm:$0xff] %vm715, 0.0
        %725 = vst.msk [vmem:[#allocation3 + $0x48] sm:$0xff] %vm715, 0.0
        %726 = vst.msk [vmem:[#allocation3 + $0x50] sm:$0xff] %vm715, 0.0
        %727 = vst.msk [vmem:[#allocation3 + $0x58] sm:$0xff] %vm715, 0.0
        %728 = vst.msk [vmem:[#allocation3 + $0x60] sm:$0xff] %vm715, 0.0
        %729 = vst.msk [vmem:[#allocation3 + $0x68] sm:$0xff] %vm715, 0.0
        %730 = vst.msk [vmem:[#allocation3 + $0x70] sm:$0xff] %vm715, 0.0
        %731 = vst.msk [vmem:[#allocation3 + $0x78] sm:$0xff] %vm715, 0.0
        %732 = vst.msk [vmem:[#allocation3 + $0x80] sm:$0xff] %vm715, 0.0
        %733 = vst.msk [vmem:[#allocation3 + $0x88] sm:$0xff] %vm715, 0.0
        %734 = vst.msk [vmem:[#allocation3 + $0x90] sm:$0xff] %vm715, 0.0
        %735 = vst.msk [vmem:[#allocation3 + $0x98] sm:$0xff] %vm715, 0.0
        %736 = vst.msk [vmem:[#allocation3 + $0xa0] sm:$0xff] %vm715, 0.0
        %737 = vst.msk [vmem:[#allocation3 + $0xa8] sm:$0xff] %vm715, 0.0
        %738 = vst.msk [vmem:[#allocation3 + $0xb0] sm:$0xff] %vm715, 0.0
        %739 = vst.msk [vmem:[#allocation3 + $0xb8] sm:$0xff] %vm715, 0.0
        %740 = vst.msk [vmem:[#allocation3 + $0xc0] sm:$0xff] %vm715, 0.0
        %741 = vst.msk [vmem:[#allocation3 + $0xc8] sm:$0xff] %vm715, 0.0
        %742 = vst.msk [vmem:[#allocation3 + $0xd0] sm:$0xff] %vm715, 0.0
        %743 = vst.msk [vmem:[#allocation3 + $0xd8] sm:$0xff] %vm715, 0.0
        %744 = vst.msk [vmem:[#allocation3 + $0xe0] sm:$0xff] %vm715, 0.0
        %745 = vst.msk [vmem:[#allocation3 + $0xe8] sm:$0xff] %vm715, 0.0
        %746 = vst.msk [vmem:[#allocation3 + $0xf0] sm:$0xff] %vm715, 0.0
        %747 = vst.msk [vmem:[#allocation3 + $0xf8] sm:$0xff] %vm715, 0.0
        %748 = vst.msk [vmem:[#allocation4] sm:$0xff] %vm360, 0.0
        %749 = vst.msk [vmem:[#allocation4 + $0x8] sm:$0xff] %vm360, 0.0
        %750 = vst.msk [vmem:[#allocation4 + $0x10] sm:$0xff] %vm360, 0.0
        %751 = vst.msk [vmem:[#allocation4 + $0x18] sm:$0xff] %vm360, 0.0
        %752 = vst.msk [vmem:[#allocation4 + $0x20] sm:$0xff] %vm360, 0.0
        %753 = vst.msk [vmem:[#allocation4 + $0x28] sm:$0xff] %vm360, 0.0
        %754 = vst.msk [vmem:[#allocation4 + $0x30] sm:$0xff] %vm360, 0.0
        %755 = vst.msk [vmem:[#allocation4 + $0x38] sm:$0xff] %vm360, 0.0
        %756 = vst.msk [vmem:[#allocation4 + $0x40] sm:$0xff] %vm360, 0.0
        %757 = vst.msk [vmem:[#allocation4 + $0x48] sm:$0xff] %vm360, 0.0
        %758 = vst.msk [vmem:[#allocation4 + $0x50] sm:$0xff] %vm360, 0.0
        %759 = vst.msk [vmem:[#allocation4 + $0x58] sm:$0xff] %vm360, 0.0
        %760 = vst.msk [vmem:[#allocation4 + $0x60] sm:$0xff] %vm360, 0.0
        %761 = vst.msk [vmem:[#allocation4 + $0x68] sm:$0xff] %vm360, 0.0
        %762 = vst.msk [vmem:[#allocation4 + $0x70] sm:$0xff] %vm360, 0.0
        %763 = vst.msk [vmem:[#allocation4 + $0x78] sm:$0xff] %vm360, 0.0
        %764 = vst.msk [vmem:[#allocation4 + $0x80] sm:$0xff] %vm360, 0.0
        %765 = vst.msk [vmem:[#allocation4 + $0x88] sm:$0xff] %vm360, 0.0
        %766 = vst.msk [vmem:[#allocation4 + $0x90] sm:$0xff] %vm360, 0.0
        %767 = vst.msk [vmem:[#allocation4 + $0x98] sm:$0xff] %vm360, 0.0
        %768 = vst.msk [vmem:[#allocation4 + $0xa0] sm:$0xff] %vm360, 0.0
        %769 = vst.msk [vmem:[#allocation4 + $0xa8] sm:$0xff] %vm360, 0.0
        %770 = vst.msk [vmem:[#allocation4 + $0xb0] sm:$0xff] %vm360, 0.0
        %771 = vst.msk [vmem:[#allocation4 + $0xb8] sm:$0xff] %vm360, 0.0
        %772 = vst.msk [vmem:[#allocation4 + $0xc0] sm:$0xff] %vm360, 0.0
        %773 = vst.msk [vmem:[#allocation4 + $0xc8] sm:$0xff] %vm360, 0.0
        %774 = vst.msk [vmem:[#allocation4 + $0xd0] sm:$0xff] %vm360, 0.0
        %775 = vst.msk [vmem:[#allocation4 + $0xd8] sm:$0xff] %vm360, 0.0
        %776 = vst.msk [vmem:[#allocation4 + $0xe0] sm:$0xff] %vm360, 0.0
        %777 = vst.msk [vmem:[#allocation4 + $0xe8] sm:$0xff] %vm360, 0.0
        %778 = vst.msk [vmem:[#allocation4 + $0xf0] sm:$0xff] %vm360, 0.0
        %779 = vst.msk [vmem:[#allocation4 + $0xf8] sm:$0xff] %vm360, 0.0
      $region40: #{tpu_custom_call.1} parent=35 // pred_fallthru
        _
      %v780 = vld [vmem:[%s294] sm:$0xff]
      %v781 = vld [vmem:[%s294 + $0x8] sm:$0xff]
      %v782 = vld [vmem:[%s294 + $0x10] sm:$0xff]
      %v783 = vld [vmem:[%s294 + $0x18] sm:$0xff]
      %v784 = vld [vmem:[%s294 + $0x20] sm:$0xff]
      %v785 = vld [vmem:[%s294 + $0x28] sm:$0xff]
      %v786 = vld [vmem:[%s294 + $0x30] sm:$0xff]
      %v787 = vld [vmem:[%s294 + $0x38] sm:$0xff]
      %v788 = vld [vmem:[%s294 + $0x40] sm:$0xff]
      %v789 = vld [vmem:[%s294 + $0x48] sm:$0xff]
      %v790 = vld [vmem:[%s294 + $0x50] sm:$0xff]
      %v791 = vld [vmem:[%s294 + $0x58] sm:$0xff]
      %v792 = vld [vmem:[%s294 + $0x60] sm:$0xff]
      %v793 = vld [vmem:[%s294 + $0x68] sm:$0xff]
      %v794 = vld [vmem:[%s294 + $0x70] sm:$0xff]
      %v795 = vld [vmem:[%s294 + $0x78] sm:$0xff]
      %v796 = vld [vmem:[%s294 + $0x80] sm:$0xff]
      %v797 = vld [vmem:[%s294 + $0x88] sm:$0xff]
      %v798 = vld [vmem:[%s294 + $0x90] sm:$0xff]
      %v799 = vld [vmem:[%s294 + $0x98] sm:$0xff]
      %v800 = vld [vmem:[%s294 + $0xa0] sm:$0xff]
      %v801 = vld [vmem:[%s294 + $0xa8] sm:$0xff]
      %v802 = vld [vmem:[%s294 + $0xb0] sm:$0xff]
      %v803 = vld [vmem:[%s294 + $0xb8] sm:$0xff]
      %v804 = vld [vmem:[%s294 + $0xc0] sm:$0xff]
      %v805 = vld [vmem:[%s294 + $0xc8] sm:$0xff]
      %v806 = vld [vmem:[%s294 + $0xd0] sm:$0xff]
      %v807 = vld [vmem:[%s294 + $0xd8] sm:$0xff]
      %v808 = vld [vmem:[%s294 + $0xe0] sm:$0xff]
      %v809 = vld [vmem:[%s294 + $0xe8] sm:$0xff]
      %v810 = vld [vmem:[%s294 + $0xf0] sm:$0xff]
      %v811 = vld [vmem:[%s294 + $0xf8] sm:$0xff]
      %v812 = vld [vmem:[%s304] sm:$0xff]
      %v813 = vld [vmem:[%s304 + $0x8] sm:$0xff]
      %v814 = vld [vmem:[%s304 + $0x10] sm:$0xff]
      %v815 = vld [vmem:[%s304 + $0x18] sm:$0xff]
      %v816 = vld [vmem:[%s304 + $0x20] sm:$0xff]
      %v817 = vld [vmem:[%s304 + $0x28] sm:$0xff]
      %v818 = vld [vmem:[%s304 + $0x30] sm:$0xff]
      %v819 = vld [vmem:[%s304 + $0x38] sm:$0xff]
      %v820 = vld [vmem:[%s304 + $0x40] sm:$0xff]
      %v821 = vld [vmem:[%s304 + $0x48] sm:$0xff]
      %v822 = vld [vmem:[%s304 + $0x50] sm:$0xff]
      %v823 = vld [vmem:[%s304 + $0x58] sm:$0xff]
      %v824 = vld [vmem:[%s304 + $0x60] sm:$0xff]
      %v825 = vld [vmem:[%s304 + $0x68] sm:$0xff]
      %v826 = vld [vmem:[%s304 + $0x70] sm:$0xff]
      %v827 = vld [vmem:[%s304 + $0x78] sm:$0xff]
      %v828 = vld [vmem:[%s304 + $0x80] sm:$0xff]
      %v829 = vld [vmem:[%s304 + $0x88] sm:$0xff]
      %v830 = vld [vmem:[%s304 + $0x90] sm:$0xff]
      %v831 = vld [vmem:[%s304 + $0x98] sm:$0xff]
      %v832 = vld [vmem:[%s304 + $0xa0] sm:$0xff]
      %v833 = vld [vmem:[%s304 + $0xa8] sm:$0xff]
      %v834 = vld [vmem:[%s304 + $0xb0] sm:$0xff]
      %v835 = vld [vmem:[%s304 + $0xb8] sm:$0xff]
      %v836 = vld [vmem:[%s304 + $0xc0] sm:$0xff]
      %v837 = vld [vmem:[%s304 + $0xc8] sm:$0xff]
      %v838 = vld [vmem:[%s304 + $0xd0] sm:$0xff]
      %v839 = vld [vmem:[%s304 + $0xd8] sm:$0xff]
      %v840 = vld [vmem:[%s304 + $0xe0] sm:$0xff]
      %v841 = vld [vmem:[%s304 + $0xe8] sm:$0xff]
      %v842 = vld [vmem:[%s304 + $0xf0] sm:$0xff]
      %v843 = vld [vmem:[%s304 + $0xf8] sm:$0xff]
      %v844 = vld [vmem:[#allocation2] sm:$0xff]
      %v845 = vld [vmem:[#allocation2 + $0x8] sm:$0xff]
      %v846 = vld [vmem:[#allocation2 + $0x10] sm:$0xff]
      %v847 = vld [vmem:[#allocation2 + $0x18] sm:$0xff]
      %v848 = vld [vmem:[#allocation2 + $0x20] sm:$0xff]
      %v849 = vld [vmem:[#allocation2 + $0x28] sm:$0xff]
      %v850 = vld [vmem:[#allocation2 + $0x30] sm:$0xff]
      %v851 = vld [vmem:[#allocation2 + $0x38] sm:$0xff]
      %v852 = vld [vmem:[#allocation2 + $0x40] sm:$0xff]
      %v853 = vld [vmem:[#allocation2 + $0x48] sm:$0xff]
      %v854 = vld [vmem:[#allocation2 + $0x50] sm:$0xff]
      %v855 = vld [vmem:[#allocation2 + $0x58] sm:$0xff]
      %v856 = vld [vmem:[#allocation2 + $0x60] sm:$0xff]
      %v857 = vld [vmem:[#allocation2 + $0x68] sm:$0xff]
      %v858 = vld [vmem:[#allocation2 + $0x70] sm:$0xff]
      %v859 = vld [vmem:[#allocation2 + $0x78] sm:$0xff]
      %v860 = vld [vmem:[#allocation2 + $0x80] sm:$0xff]
      %v861 = vld [vmem:[#allocation2 + $0x88] sm:$0xff]
      %v862 = vld [vmem:[#allocation2 + $0x90] sm:$0xff]
      %v863 = vld [vmem:[#allocation2 + $0x98] sm:$0xff]
      %v864 = vld [vmem:[#allocation2 + $0xa0] sm:$0xff]
      %v865 = vld [vmem:[#allocation2 + $0xa8] sm:$0xff]
      %v866 = vld [vmem:[#allocation2 + $0xb0] sm:$0xff]
      %v867 = vld [vmem:[#allocation2 + $0xb8] sm:$0xff]
      %v868 = vld [vmem:[#allocation2 + $0xc0] sm:$0xff]
      %v869 = vld [vmem:[#allocation2 + $0xc8] sm:$0xff]
      %v870 = vld [vmem:[#allocation2 + $0xd0] sm:$0xff]
      %v871 = vld [vmem:[#allocation2 + $0xd8] sm:$0xff]
      %v872 = vld [vmem:[#allocation2 + $0xe0] sm:$0xff]
      %v873 = vld [vmem:[#allocation2 + $0xe8] sm:$0xff]
      %v874 = vld [vmem:[#allocation2 + $0xf0] sm:$0xff]
      %v875 = vld [vmem:[#allocation2 + $0xf8] sm:$0xff]
      %vm876 = vcmask 392192
      %v878 = vsel %vm876, %v844, 0
      %v881 = vsel %vm876, %v845, 0
      %v884 = vsel %vm876, %v846, 0
      %v887 = vsel %vm876, %v847, 0
      %v890 = vsel %vm876, %v848, 0
      %v893 = vsel %vm876, %v849, 0
      %v896 = vsel %vm876, %v850, 0
      %v899 = vsel %vm876, %v851, 0
      %v902 = vsel %vm876, %v852, 0
      %v905 = vsel %vm876, %v853, 0
      %v908 = vsel %vm876, %v854, 0
      %v911 = vsel %vm876, %v855, 0
      %v914 = vsel %vm876, %v856, 0
      %v917 = vsel %vm876, %v857, 0
      %v920 = vsel %vm876, %v858, 0
      %v923 = vsel %vm876, %v859, 0
      %v926 = vsel %vm876, %v860, 0
      %v929 = vsel %vm876, %v861, 0
      %v932 = vsel %vm876, %v862, 0
      %v935 = vsel %vm876, %v863, 0
      %v938 = vsel %vm876, %v864, 0
      %v941 = vsel %vm876, %v865, 0
      %v944 = vsel %vm876, %v866, 0
      %v947 = vsel %vm876, %v867, 0
      %v950 = vsel %vm876, %v868, 0
      %v953 = vsel %vm876, %v869, 0
      %v956 = vsel %vm876, %v870, 0
      %v959 = vsel %vm876, %v871, 0
      %v962 = vsel %vm876, %v872, 0
      %v965 = vsel %vm876, %v873, 0
      %v968 = vsel %vm876, %v874, 0
      %v971 = vsel %vm876, %v875, 0
      %v974 = vsel %vm876, %v780, 0
      %v977 = vsel %vm876, %v781, 0
      %v980 = vsel %vm876, %v782, 0
      %v983 = vsel %vm876, %v783, 0
      %v986 = vsel %vm876, %v784, 0
      %v989 = vsel %vm876, %v785, 0
      %v992 = vsel %vm876, %v786, 0
      %v995 = vsel %vm876, %v787, 0
      %v998 = vsel %vm876, %v788, 0
      %v1001 = vsel %vm876, %v789, 0
      %v1004 = vsel %vm876, %v790, 0
      %v1007 = vsel %vm876, %v791, 0
      %v1010 = vsel %vm876, %v792, 0
      %v1013 = vsel %vm876, %v793, 0
      %v1016 = vsel %vm876, %v794, 0
      %v1019 = vsel %vm876, %v795, 0
      %v1022 = vsel %vm876, %v796, 0
      %v1025 = vsel %vm876, %v797, 0
      %v1028 = vsel %vm876, %v798, 0
      %v1031 = vsel %vm876, %v799, 0
      %v1034 = vsel %vm876, %v800, 0
      %v1037 = vsel %vm876, %v801, 0
      %v1040 = vsel %vm876, %v802, 0
      %v1043 = vsel %vm876, %v803, 0
      %v1046 = vsel %vm876, %v804, 0
      %v1049 = vsel %vm876, %v805, 0
      %v1052 = vsel %vm876, %v806, 0
      %v1055 = vsel %vm876, %v807, 0
      %v1058 = vsel %vm876, %v808, 0
      %v1061 = vsel %vm876, %v809, 0
      %v1064 = vsel %vm876, %v810, 0
      %v1067 = vsel %vm876, %v811, 0
      %1069 = vmatprep.subr.mxu0 0.0
      %1070 = vmatpush1.xpose.msra.mxu0 %v974
      %1071 = vmatprep.subr.mxu0 0.0
      %1072 = vmatpush1.xpose.msra.mxu0 %v977
      %1073 = vmatprep.subr.mxu0 0.0
      %1074 = vmatpush1.xpose.msra.mxu0 %v980
      %1075 = vmatprep.subr.mxu0 0.0
      %1076 = vmatpush1.xpose.msra.mxu0 %v983
      %1077 = vmatprep.subr.mxu0 0.0
      %1078 = vmatpush1.xpose.msra.mxu0 %v986
      %1079 = vmatprep.subr.mxu0 0.0
      %1080 = vmatpush1.xpose.msra.mxu0 %v989
      %1081 = vmatprep.subr.mxu0 0.0
      %1082 = vmatpush1.xpose.msra.mxu0 %v992
      %1083 = vmatprep.subr.mxu0 0.0
      %1084 = vmatpush1.xpose.msra.mxu0 %v995
      %1085 = vmatprep.subr.mxu0 0.0
      %1086 = vmatpush1.xpose.msra.mxu0 %v998
      %1087 = vmatprep.subr.mxu0 0.0
      %1088 = vmatpush1.xpose.msra.mxu0 %v1001
      %1089 = vmatprep.subr.mxu0 0.0
      %1090 = vmatpush1.xpose.msra.mxu0 %v1004
      %1091 = vmatprep.subr.mxu0 0.0
      %1092 = vmatpush1.xpose.msra.mxu0 %v1007
      %1093 = vmatprep.subr.mxu0 0.0
      %1094 = vmatpush1.xpose.msra.mxu0 %v1010
      %1095 = vmatprep.subr.mxu0 0.0
      %1096 = vmatpush1.xpose.msra.mxu0 %v1013
      %1097 = vmatprep.subr.mxu0 0.0
      %1098 = vmatpush1.xpose.msra.mxu0 %v1016
      %1099 = vmatprep.subr.mxu0 0.0
      %1100 = vmatpush1.xpose.msra.mxu0 %v1019
      %1101 = vmatprep.subr.mxu0 0.0
      %1102 = vmatpush1.xpose.msra.mxu0 %v1022
      %1103 = vmatprep.subr.mxu0 0.0
      %1104 = vmatpush1.xpose.msra.mxu0 %v1025
      %1105 = vmatprep.subr.mxu0 0.0
      %1106 = vmatpush1.xpose.msra.mxu0 %v1028
      %1107 = vmatprep.subr.mxu0 0.0
      %1108 = vmatpush1.xpose.msra.mxu0 %v1031
      %1109 = vmatprep.subr.mxu0 0.0
      %1110 = vmatpush1.xpose.msra.mxu0 %v1034
      %1111 = vmatprep.subr.mxu0 0.0
      %1112 = vmatpush1.xpose.msra.mxu0 %v1037
      %1113 = vmatprep.subr.mxu0 0.0
      %1114 = vmatpush1.xpose.msra.mxu0 %v1040
      %1115 = vmatprep.subr.mxu0 0.0
      %1116 = vmatpush1.xpose.msra.mxu0 %v1043
      %1117 = vmatprep.subr.mxu0 0.0
      %1118 = vmatpush1.xpose.msra.mxu0 %v1046
      %1119 = vmatprep.subr.mxu0 0.0
      %1120 = vmatpush1.xpose.msra.mxu0 %v1049
      %1121 = vmatprep.subr.mxu0 0.0
      %1122 = vmatpush1.xpose.msra.mxu0 %v1052
      %1123 = vmatprep.subr.mxu0 0.0
      %1124 = vmatpush1.xpose.msra.mxu0 %v1055
      %1125 = vmatprep.subr.mxu0 0.0
      %1126 = vmatpush1.xpose.msra.mxu0 %v1058
      %1127 = vmatprep.subr.mxu0 0.0
      %1128 = vmatpush1.xpose.msra.mxu0 %v1061
      %1129 = vmatprep.subr.mxu0 0.0
      %1130 = vmatpush1.xpose.msra.mxu0 %v1064
      %1131 = vmatprep.subr.mxu0 0.0
      %1132 = vmatpush1.xpose.msra.mxu0 %v1067
      %1133 = vmatprep.mubr.f32.mxu0 0.0
      %1134 = vmatmul.mubr.f32.gmra.mrb[0].mxu0 %v878
      %v1135 = vpop.f32.mrb[0].mxu0
      %v1136 = vadd.f32 0.0, %v1135
      %v1137 = vpop.f32.mrb[0].mxu0
      %v1138 = vadd.f32 0.0, %v1137
      %1139 = vmatprep.mubr.f32.mxu0 0.0
      %1140 = vmatmul.mubr.f32.gmra.mrb[0].mxu0 %v881
      %v1141 = vpop.f32.mrb[0].mxu0
      %v1142 = vadd.f32 0.0, %v1141
      %v1143 = vpop.f32.mrb[0].mxu0
      %v1144 = vadd.f32 0.0, %v1143
      %1145 = vmatprep.mubr.f32.mxu0 0.0
      %1146 = vmatmul.mubr.f32.gmra.mrb[0].mxu0 %v884
      %v1147 = vpop.f32.mrb[0].mxu0
      %v1148 = vadd.f32 0.0, %v1147
      %v1149 = vpop.f32.mrb[0].mxu0
      %v1150 = vadd.f32 0.0, %v1149
      %1151 = vmatprep.mubr.f32.mxu0 0.0
      %1152 = vmatmul.mubr.f32.gmra.mrb[0].mxu0 %v887
      %v1153 = vpop.f32.mrb[0].mxu0
      %v1154 = vadd.f32 0.0, %v1153
      %v1155 = vpop.f32.mrb[0].mxu0
      %v1156 = vadd.f32 0.0, %v1155
      %1157 = vmatprep.mubr.f32.mxu0 0.0
      %1158 = vmatmul.mubr.f32.gmra.mrb[0].mxu0 %v890
      %v1159 = vpop.f32.mrb[0].mxu0
      %v1160 = vadd.f32 0.0, %v1159
      %v1161 = vpop.f32.mrb[0].mxu0
      %v1162 = vadd.f32 0.0, %v1161
      %1163 = vmatprep.mubr.f32.mxu0 0.0
      %1164 = vmatmul.mubr.f32.gmra.mrb[0].mxu0 %v893
      %v1165 = vpop.f32.mrb[0].mxu0
      %v1166 = vadd.f32 0.0, %v1165
      %v1167 = vpop.f32.mrb[0].mxu0
      %v1168 = vadd.f32 0.0, %v1167
      %1169 = vmatprep.mubr.f32.mxu0 0.0
      %1170 = vmatmul.mubr.f32.gmra.mrb[0].mxu0 %v896
      %v1171 = vpop.f32.mrb[0].mxu0
      %v1172 = vadd.f32 0.0, %v1171
      %v1173 = vpop.f32.mrb[0].mxu0
      %v1174 = vadd.f32 0.0, %v1173
      %1175 = vmatprep.mubr.f32.mxu0 0.0
      %1176 = vmatmul.mubr.f32.gmra.mrb[0].mxu0 %v899
      %v1177 = vpop.f32.mrb[0].mxu0
      %v1178 = vadd.f32 0.0, %v1177
      %v1179 = vpop.f32.mrb[0].mxu0
      %v1180 = vadd.f32 0.0, %v1179
      %1181 = vmatprep.mubr.f32.mxu0 0.0
      %1182 = vmatmul.mubr.f32.gmra.mrb[0].mxu0 %v902
      %v1183 = vpop.f32.mrb[0].mxu0
      %v1184 = vadd.f32 0.0, %v1183
      %v1185 = vpop.f32.mrb[0].mxu0
      %v1186 = vadd.f32 0.0, %v1185
      %1187 = vmatprep.mubr.f32.mxu0 0.0
      %1188 = vmatmul.mubr.f32.gmra.mrb[0].mxu0 %v905
      %v1189 = vpop.f32.mrb[0].mxu0
      %v1190 = vadd.f32 0.0, %v1189
      %v1191 = vpop.f32.mrb[0].mxu0
      %v1192 = vadd.f32 0.0, %v1191
      %1193 = vmatprep.mubr.f32.mxu0 0.0
      %1194 = vmatmul.mubr.f32.gmra.mrb[0].mxu0 %v908
      %v1195 = vpop.f32.mrb[0].mxu0
      %v1196 = vadd.f32 0.0, %v1195
      %v1197 = vpop.f32.mrb[0].mxu0
      %v1198 = vadd.f32 0.0, %v1197
      %1199 = vmatprep.mubr.f32.mxu0 0.0
      %1200 = vmatmul.mubr.f32.gmra.mrb[0].mxu0 %v911
      %v1201 = vpop.f32.mrb[0].mxu0
      %v1202 = vadd.f32 0.0, %v1201
      %v1203 = vpop.f32.mrb[0].mxu0
      %v1204 = vadd.f32 0.0, %v1203
      %1205 = vmatprep.mubr.f32.mxu0 0.0
      %1206 = vmatmul.mubr.f32.gmra.mrb[0].mxu0 %v914
      %v1207 = vpop.f32.mrb[0].mxu0
      %v1208 = vadd.f32 0.0, %v1207
      %v1209 = vpop.f32.mrb[0].mxu0
      %v1210 = vadd.f32 0.0, %v1209
      %1211 = vmatprep.mubr.f32.mxu0 0.0
      %1212 = vmatmul.mubr.f32.gmra.mrb[0].mxu0 %v917
      %v1213 = vpop.f32.mrb[0].mxu0
      %v1214 = vadd.f32 0.0, %v1213
      %v1215 = vpop.f32.mrb[0].mxu0
      %v1216 = vadd.f32 0.0, %v1215
      %1217 = vmatprep.mubr.f32.mxu0 0.0
      %1218 = vmatmul.mubr.f32.gmra.mrb[0].mxu0 %v920
      %v1219 = vpop.f32.mrb[0].mxu0
      %v1220 = vadd.f32 0.0, %v1219
      %v1221 = vpop.f32.mrb[0].mxu0
      %v1222 = vadd.f32 0.0, %v1221
      %1223 = vmatprep.mubr.f32.mxu0 0.0
      %1224 = vmatmul.mubr.f32.gmra.mrb[0].mxu0 %v923
      %v1225 = vpop.f32.mrb[0].mxu0
      %v1226 = vadd.f32 0.0, %v1225
      %v1227 = vpop.f32.mrb[0].mxu0
      %v1228 = vadd.f32 0.0, %v1227
      %1229 = vmatprep.mubr.f32.mxu0 0.0
      %1230 = vmatmul.mubr.f32.gmra.mrb[0].mxu0 %v926
      %v1231 = vpop.f32.mrb[0].mxu0
      %v1232 = vadd.f32 0.0, %v1231
      %v1233 = vpop.f32.mrb[0].mxu0
      %v1234 = vadd.f32 0.0, %v1233
      %1235 = vmatprep.mubr.f32.mxu0 0.0
      %1236 = vmatmul.mubr.f32.gmra.mrb[0].mxu0 %v929
      %v1237 = vpop.f32.mrb[0].mxu0
      %v1238 = vadd.f32 0.0, %v1237
      %v1239 = vpop.f32.mrb[0].mxu0
      %v1240 = vadd.f32 0.0, %v1239
      %1241 = vmatprep.mubr.f32.mxu0 0.0
      %1242 = vmatmul.mubr.f32.gmra.mrb[0].mxu0 %v932
      %v1243 = vpop.f32.mrb[0].mxu0
      %v1244 = vadd.f32 0.0, %v1243
      %v1245 = vpop.f32.mrb[0].mxu0
      %v1246 = vadd.f32 0.0, %v1245
      %1247 = vmatprep.mubr.f32.mxu0 0.0
      %1248 = vmatmul.mubr.f32.gmra.mrb[0].mxu0 %v935
      %v1249 = vpop.f32.mrb[0].mxu0
      %v1250 = vadd.f32 0.0, %v1249
      %v1251 = vpop.f32.mrb[0].mxu0
      %v1252 = vadd.f32 0.0, %v1251
      %1253 = vmatprep.mubr.f32.mxu0 0.0
      %1254 = vmatmul.mubr.f32.gmra.mrb[0].mxu0 %v938
      %v1255 = vpop.f32.mrb[0].mxu0
      %v1256 = vadd.f32 0.0, %v1255
      %v1257 = vpop.f32.mrb[0].mxu0
      %v1258 = vadd.f32 0.0, %v1257
      %1259 = vmatprep.mubr.f32.mxu0 0.0
      %1260 = vmatmul.mubr.f32.gmra.mrb[0].mxu0 %v941
      %v1261 = vpop.f32.mrb[0].mxu0
      %v1262 = vadd.f32 0.0, %v1261
      %v1263 = vpop.f32.mrb[0].mxu0
      %v1264 = vadd.f32 0.0, %v1263
      %1265 = vmatprep.mubr.f32.mxu0 0.0
      %1266 = vmatmul.mubr.f32.gmra.mrb[0].mxu0 %v944
      %v1267 = vpop.f32.mrb[0].mxu0
      %v1268 = vadd.f32 0.0, %v1267
      %v1269 = vpop.f32.mrb[0].mxu0
      %v1270 = vadd.f32 0.0, %v1269
      %1271 = vmatprep.mubr.f32.mxu0 0.0
      %1272 = vmatmul.mubr.f32.gmra.mrb[0].mxu0 %v947
      %v1273 = vpop.f32.mrb[0].mxu0
      %v1274 = vadd.f32 0.0, %v1273
      %v1275 = vpop.f32.mrb[0].mxu0
      %v1276 = vadd.f32 0.0, %v1275
      %1277 = vmatprep.mubr.f32.mxu0 0.0
      %1278 = vmatmul.mubr.f32.gmra.mrb[0].mxu0 %v950
      %v1279 = vpop.f32.mrb[0].mxu0
      %v1280 = vadd.f32 0.0, %v1279
      %v1281 = vpop.f32.mrb[0].mxu0
      %v1282 = vadd.f32 0.0, %v1281
      %1283 = vmatprep.mubr.f32.mxu0 0.0
      %1284 = vmatmul.mubr.f32.gmra.mrb[0].mxu0 %v953
      %v1285 = vpop.f32.mrb[0].mxu0
      %v1286 = vadd.f32 0.0, %v1285
      %v1287 = vpop.f32.mrb[0].mxu0
      %v1288 = vadd.f32 0.0, %v1287
      %1289 = vmatprep.mubr.f32.mxu0 0.0
      %1290 = vmatmul.mubr.f32.gmra.mrb[0].mxu0 %v956
      %v1291 = vpop.f32.mrb[0].mxu0
      %v1292 = vadd.f32 0.0, %v1291
      %v1293 = vpop.f32.mrb[0].mxu0
      %v1294 = vadd.f32 0.0, %v1293
      %1295 = vmatprep.mubr.f32.mxu0 0.0
      %1296 = vmatmul.mubr.f32.gmra.mrb[0].mxu0 %v959
      %v1297 = vpop.f32.mrb[0].mxu0
      %v1298 = vadd.f32 0.0, %v1297
      %v1299 = vpop.f32.mrb[0].mxu0
      %v1300 = vadd.f32 0.0, %v1299
      %1301 = vmatprep.mubr.f32.mxu0 0.0
      %1302 = vmatmul.mubr.f32.gmra.mrb[0].mxu0 %v962
      %v1303 = vpop.f32.mrb[0].mxu0
      %v1304 = vadd.f32 0.0, %v1303
      %v1305 = vpop.f32.mrb[0].mxu0
      %v1306 = vadd.f32 0.0, %v1305
      %1307 = vmatprep.mubr.f32.mxu0 0.0
      %1308 = vmatmul.mubr.f32.gmra.mrb[0].mxu0 %v965
      %v1309 = vpop.f32.mrb[0].mxu0
      %v1310 = vadd.f32 0.0, %v1309
      %v1311 = vpop.f32.mrb[0].mxu0
      %v1312 = vadd.f32 0.0, %v1311
      %1313 = vmatprep.mubr.f32.mxu0 0.0
      %1314 = vmatmul.mubr.f32.gmra.mrb[0].mxu0 %v968
      %v1315 = vpop.f32.mrb[0].mxu0
      %v1316 = vadd.f32 0.0, %v1315
      %v1317 = vpop.f32.mrb[0].mxu0
      %v1318 = vadd.f32 0.0, %v1317
      %1319 = vmatprep.mubr.f32.mxu0 0.0
      %1320 = vmatmul.mubr.f32.gmra.mrb[0].mxu0 %v971
      %v1321 = vpop.f32.mrb[0].mxu0
      %v1322 = vadd.f32 0.0, %v1321
      %v1323 = vpop.f32.mrb[0].mxu0
      %v1324 = vadd.f32 0.0, %v1323
      %1325 = vdwg.mxu0
      %v1326 = vtanh.pop %v1136
      %v1327 = vtanh.pop %v1138
      %v1328 = vtanh.pop %v1142
      %v1329 = vtanh.pop %v1144
      %v1330 = vtanh.pop %v1148
      %v1331 = vtanh.pop %v1150
      %v1332 = vtanh.pop %v1154
      %v1333 = vtanh.pop %v1156
      %v1334 = vtanh.pop %v1160
      %v1335 = vtanh.pop %v1162
      %v1336 = vtanh.pop %v1166
      %v1337 = vtanh.pop %v1168
      %v1338 = vtanh.pop %v1172
      %v1339 = vtanh.pop %v1174
      %v1340 = vtanh.pop %v1178
      %v1341 = vtanh.pop %v1180
      %v1342 = vtanh.pop %v1184
      %v1343 = vtanh.pop %v1186
      %v1344 = vtanh.pop %v1190
      %v1345 = vtanh.pop %v1192
      %v1346 = vtanh.pop %v1196
      %v1347 = vtanh.pop %v1198
      %v1348 = vtanh.pop %v1202
      %v1349 = vtanh.pop %v1204
      %v1350 = vtanh.pop %v1208
      %v1351 = vtanh.pop %v1210
      %v1352 = vtanh.pop %v1214
      %v1353 = vtanh.pop %v1216
      %v1354 = vtanh.pop %v1220
      %v1355 = vtanh.pop %v1222
      %v1356 = vtanh.pop %v1226
      %v1357 = vtanh.pop %v1228
      %v1358 = vtanh.pop %v1232
      %v1359 = vtanh.pop %v1234
      %v1360 = vtanh.pop %v1238
      %v1361 = vtanh.pop %v1240
      %v1362 = vtanh.pop %v1244
      %v1363 = vtanh.pop %v1246
      %v1364 = vtanh.pop %v1250
      %v1365 = vtanh.pop %v1252
      %v1366 = vtanh.pop %v1256
      %v1367 = vtanh.pop %v1258
      %v1368 = vtanh.pop %v1262
      %v1369 = vtanh.pop %v1264
      %v1370 = vtanh.pop %v1268
      %v1371 = vtanh.pop %v1270
      %v1372 = vtanh.pop %v1274
      %v1373 = vtanh.pop %v1276
      %v1374 = vtanh.pop %v1280
      %v1375 = vtanh.pop %v1282
      %v1376 = vtanh.pop %v1286
      %v1377 = vtanh.pop %v1288
      %v1378 = vtanh.pop %v1292
      %v1379 = vtanh.pop %v1294
      %v1380 = vtanh.pop %v1298
      %v1381 = vtanh.pop %v1300
      %v1382 = vtanh.pop %v1304
      %v1383 = vtanh.pop %v1306
      %v1384 = vtanh.pop %v1310
      %v1385 = vtanh.pop %v1312
      %v1386 = vtanh.pop %v1316
      %v1387 = vtanh.pop %v1318
      %v1388 = vtanh.pop %v1322
      %v1389 = vtanh.pop %v1324
      %v1390 = vmul.f32 %v1326, 1.442695
      %v1391 = vpow.pop %v1390
      %v1392 = vmul.f32 %v1327, 1.442695
      %v1393 = vpow.pop %v1392
      %v1394 = vmul.f32 %v1328, 1.442695
      %v1395 = vpow.pop %v1394
      %v1396 = vmul.f32 %v1329, 1.442695
      %v1397 = vpow.pop %v1396
      %v1398 = vmul.f32 %v1330, 1.442695
      %v1399 = vpow.pop %v1398
      %v1400 = vmul.f32 %v1331, 1.442695
      %v1401 = vpow.pop %v1400
      %v1402 = vmul.f32 %v1332, 1.442695
      %v1403 = vpow.pop %v1402
      %v1404 = vmul.f32 %v1333, 1.442695
      %v1405 = vpow.pop %v1404
      %v1406 = vmul.f32 %v1334, 1.442695
      %v1407 = vpow.pop %v1406
      %v1408 = vmul.f32 %v1335, 1.442695
      %v1409 = vpow.pop %v1408
      %v1410 = vmul.f32 %v1336, 1.442695
      %v1411 = vpow.pop %v1410
      %v1412 = vmul.f32 %v1337, 1.442695
      %v1413 = vpow.pop %v1412
      %v1414 = vmul.f32 %v1338, 1.442695
      %v1415 = vpow.pop %v1414
      %v1416 = vmul.f32 %v1339, 1.442695
      %v1417 = vpow.pop %v1416
      %v1418 = vmul.f32 %v1340, 1.442695
      %v1419 = vpow.pop %v1418
      %v1420 = vmul.f32 %v1341, 1.442695
      %v1421 = vpow.pop %v1420
      %v1422 = vmul.f32 %v1342, 1.442695
      %v1423 = vpow.pop %v1422
      %v1424 = vmul.f32 %v1343, 1.442695
      %v1425 = vpow.pop %v1424
      %v1426 = vmul.f32 %v1344, 1.442695
      %v1427 = vpow.pop %v1426
      %v1428 = vmul.f32 %v1345, 1.442695
      %v1429 = vpow.pop %v1428
      %v1430 = vmul.f32 %v1346, 1.442695
      %v1431 = vpow.pop %v1430
      %v1432 = vmul.f32 %v1347, 1.442695
      %v1433 = vpow.pop %v1432
      %v1434 = vmul.f32 %v1348, 1.442695
      %v1435 = vpow.pop %v1434
      %v1436 = vmul.f32 %v1349, 1.442695
      %v1437 = vpow.pop %v1436
      %v1438 = vmul.f32 %v1350, 1.442695
      %v1439 = vpow.pop %v1438
      %v1440 = vmul.f32 %v1351, 1.442695
      %v1441 = vpow.pop %v1440
      %v1442 = vmul.f32 %v1352, 1.442695
      %v1443 = vpow.pop %v1442
      %v1444 = vmul.f32 %v1353, 1.442695
      %v1445 = vpow.pop %v1444
      %v1446 = vmul.f32 %v1354, 1.442695
      %v1447 = vpow.pop %v1446
      %v1448 = vmul.f32 %v1355, 1.442695
      %v1449 = vpow.pop %v1448
      %v1450 = vmul.f32 %v1356, 1.442695
      %v1451 = vpow.pop %v1450
      %v1452 = vmul.f32 %v1357, 1.442695
      %v1453 = vpow.pop %v1452
      %v1454 = vmul.f32 %v1358, 1.442695
      %v1455 = vpow.pop %v1454
      %v1456 = vmul.f32 %v1359, 1.442695
      %v1457 = vpow.pop %v1456
      %v1458 = vmul.f32 %v1360, 1.442695
      %v1459 = vpow.pop %v1458
      %v1460 = vmul.f32 %v1361, 1.442695
      %v1461 = vpow.pop %v1460
      %v1462 = vmul.f32 %v1362, 1.442695
      %v1463 = vpow.pop %v1462
      %v1464 = vmul.f32 %v1363, 1.442695
      %v1465 = vpow.pop %v1464
      %v1466 = vmul.f32 %v1364, 1.442695
      %v1467 = vpow.pop %v1466
      %v1468 = vmul.f32 %v1365, 1.442695
      %v1469 = vpow.pop %v1468
      %v1470 = vmul.f32 %v1366, 1.442695
      %v1471 = vpow.pop %v1470
      %v1472 = vmul.f32 %v1367, 1.442695
      %v1473 = vpow.pop %v1472
      %v1474 = vmul.f32 %v1368, 1.442695
      %v1475 = vpow.pop %v1474
      %v1476 = vmul.f32 %v1369, 1.442695
      %v1477 = vpow.pop %v1476
      %v1478 = vmul.f32 %v1370, 1.442695
      %v1479 = vpow.pop %v1478
      %v1480 = vmul.f32 %v1371, 1.442695
      %v1481 = vpow.pop %v1480
      %v1482 = vmul.f32 %v1372, 1.442695
      %v1483 = vpow.pop %v1482
      %v1484 = vmul.f32 %v1373, 1.442695
      %v1485 = vpow.pop %v1484
      %v1486 = vmul.f32 %v1374, 1.442695
      %v1487 = vpow.pop %v1486
      %v1488 = vmul.f32 %v1375, 1.442695
      %v1489 = vpow.pop %v1488
      %v1490 = vmul.f32 %v1376, 1.442695
      %v1491 = vpow.pop %v1490
      %v1492 = vmul.f32 %v1377, 1.442695
      %v1493 = vpow.pop %v1492
      %v1494 = vmul.f32 %v1378, 1.442695
      %v1495 = vpow.pop %v1494
      %v1496 = vmul.f32 %v1379, 1.442695
      %v1497 = vpow.pop %v1496
      %v1498 = vmul.f32 %v1380, 1.442695
      %v1499 = vpow.pop %v1498
      %v1500 = vmul.f32 %v1381, 1.442695
      %v1501 = vpow.pop %v1500
      %v1502 = vmul.f32 %v1382, 1.442695
      %v1503 = vpow.pop %v1502
      %v1504 = vmul.f32 %v1383, 1.442695
      %v1505 = vpow.pop %v1504
      %v1506 = vmul.f32 %v1384, 1.442695
      %v1507 = vpow.pop %v1506
      %v1508 = vmul.f32 %v1385, 1.442695
      %v1509 = vpow.pop %v1508
      %v1510 = vmul.f32 %v1386, 1.442695
      %v1511 = vpow.pop %v1510
      %v1512 = vmul.f32 %v1387, 1.442695
      %v1513 = vpow.pop %v1512
      %v1514 = vmul.f32 %v1388, 1.442695
      %v1515 = vpow.pop %v1514
      %v1516 = vmul.f32 %v1389, 1.442695
      %v1517 = vpow.pop %v1516
      %v1518 = vld [vmem:[#allocation3] sm:$0xff]
      %v1519 = vld [vmem:[#allocation3 + $0x8] sm:$0xff]
      %v1520 = vld [vmem:[#allocation3 + $0x10] sm:$0xff]
      %v1521 = vld [vmem:[#allocation3 + $0x18] sm:$0xff]
      %v1522 = vld [vmem:[#allocation3 + $0x20] sm:$0xff]
      %v1523 = vld [vmem:[#allocation3 + $0x28] sm:$0xff]
      %v1524 = vld [vmem:[#allocation3 + $0x30] sm:$0xff]
      %v1525 = vld [vmem:[#allocation3 + $0x38] sm:$0xff]
      %v1526 = vld [vmem:[#allocation3 + $0x40] sm:$0xff]
      %v1527 = vld [vmem:[#allocation3 + $0x48] sm:$0xff]
      %v1528 = vld [vmem:[#allocation3 + $0x50] sm:$0xff]
      %v1529 = vld [vmem:[#allocation3 + $0x58] sm:$0xff]
      %v1530 = vld [vmem:[#allocation3 + $0x60] sm:$0xff]
      %v1531 = vld [vmem:[#allocation3 + $0x68] sm:$0xff]
      %v1532 = vld [vmem:[#allocation3 + $0x70] sm:$0xff]
      %v1533 = vld [vmem:[#allocation3 + $0x78] sm:$0xff]
      %v1534 = vld [vmem:[#allocation3 + $0x80] sm:$0xff]
      %v1535 = vld [vmem:[#allocation3 + $0x88] sm:$0xff]
      %v1536 = vld [vmem:[#allocation3 + $0x90] sm:$0xff]
      %v1537 = vld [vmem:[#allocation3 + $0x98] sm:$0xff]
      %v1538 = vld [vmem:[#allocation3 + $0xa0] sm:$0xff]
      %v1539 = vld [vmem:[#allocation3 + $0xa8] sm:$0xff]
      %v1540 = vld [vmem:[#allocation3 + $0xb0] sm:$0xff]
      %v1541 = vld [vmem:[#allocation3 + $0xb8] sm:$0xff]
      %v1542 = vld [vmem:[#allocation3 + $0xc0] sm:$0xff]
      %v1543 = vld [vmem:[#allocation3 + $0xc8] sm:$0xff]
      %v1544 = vld [vmem:[#allocation3 + $0xd0] sm:$0xff]
      %v1545 = vld [vmem:[#allocation3 + $0xd8] sm:$0xff]
      %v1546 = vld [vmem:[#allocation3 + $0xe0] sm:$0xff]
      %v1547 = vld [vmem:[#allocation3 + $0xe8] sm:$0xff]
      %v1548 = vld [vmem:[#allocation3 + $0xf0] sm:$0xff]
      %v1549 = vld [vmem:[#allocation3 + $0xf8] sm:$0xff]
      %v1550 = vadd.f32 %v1391, %v1393
      %1551 = vadd.xlane.f32.xlu0 %v1550
      %v1552 = vpop.xlane.xlu0 %1551
      %v1553 = vadd.f32 %v1395, %v1397
      %1554 = vadd.xlane.f32.xlu0 %v1553
      %v1555 = vpop.xlane.xlu0 %1554
      %v1556 = vadd.f32 %v1399, %v1401
      %1557 = vadd.xlane.f32.xlu0 %v1556
      %v1558 = vpop.xlane.xlu0 %1557
      %v1559 = vadd.f32 %v1403, %v1405
      %1560 = vadd.xlane.f32.xlu0 %v1559
      %v1561 = vpop.xlane.xlu0 %1560
      %v1562 = vadd.f32 %v1407, %v1409
      %1563 = vadd.xlane.f32.xlu0 %v1562
      %v1564 = vpop.xlane.xlu0 %1563
      %v1565 = vadd.f32 %v1411, %v1413
      %1566 = vadd.xlane.f32.xlu0 %v1565
      %v1567 = vpop.xlane.xlu0 %1566
      %v1568 = vadd.f32 %v1415, %v1417
      %1569 = vadd.xlane.f32.xlu0 %v1568
      %v1570 = vpop.xlane.xlu0 %1569
      %v1571 = vadd.f32 %v1419, %v1421
      %1572 = vadd.xlane.f32.xlu0 %v1571
      %v1573 = vpop.xlane.xlu0 %1572
      %v1574 = vadd.f32 %v1423, %v1425
      %1575 = vadd.xlane.f32.xlu0 %v1574
      %v1576 = vpop.xlane.xlu0 %1575
      %v1577 = vadd.f32 %v1427, %v1429
      %1578 = vadd.xlane.f32.xlu0 %v1577
      %v1579 = vpop.xlane.xlu0 %1578
      %v1580 = vadd.f32 %v1431, %v1433
      %1581 = vadd.xlane.f32.xlu0 %v1580
      %v1582 = vpop.xlane.xlu0 %1581
      %v1583 = vadd.f32 %v1435, %v1437
      %1584 = vadd.xlane.f32.xlu0 %v1583
      %v1585 = vpop.xlane.xlu0 %1584
      %v1586 = vadd.f32 %v1439, %v1441
      %1587 = vadd.xlane.f32.xlu0 %v1586
      %v1588 = vpop.xlane.xlu0 %1587
      %v1589 = vadd.f32 %v1443, %v1445
      %1590 = vadd.xlane.f32.xlu0 %v1589
      %v1591 = vpop.xlane.xlu0 %1590
      %v1592 = vadd.f32 %v1447, %v1449
      %1593 = vadd.xlane.f32.xlu0 %v1592
      %v1594 = vpop.xlane.xlu0 %1593
      %v1595 = vadd.f32 %v1451, %v1453
      %1596 = vadd.xlane.f32.xlu0 %v1595
      %v1597 = vpop.xlane.xlu0 %1596
      %v1598 = vadd.f32 %v1455, %v1457
      %1599 = vadd.xlane.f32.xlu0 %v1598
      %v1600 = vpop.xlane.xlu0 %1599
      %v1601 = vadd.f32 %v1459, %v1461
      %1602 = vadd.xlane.f32.xlu0 %v1601
      %v1603 = vpop.xlane.xlu0 %1602
      %v1604 = vadd.f32 %v1463, %v1465
      %1605 = vadd.xlane.f32.xlu0 %v1604
      %v1606 = vpop.xlane.xlu0 %1605
      %v1607 = vadd.f32 %v1467, %v1469
      %1608 = vadd.xlane.f32.xlu0 %v1607
      %v1609 = vpop.xlane.xlu0 %1608
      %v1610 = vadd.f32 %v1471, %v1473
      %1611 = vadd.xlane.f32.xlu0 %v1610
      %v1612 = vpop.xlane.xlu0 %1611
      %v1613 = vadd.f32 %v1475, %v1477
      %1614 = vadd.xlane.f32.xlu0 %v1613
      %v1615 = vpop.xlane.xlu0 %1614
      %v1616 = vadd.f32 %v1479, %v1481
      %1617 = vadd.xlane.f32.xlu0 %v1616
      %v1618 = vpop.xlane.xlu0 %1617
      %v1619 = vadd.f32 %v1483, %v1485
      %1620 = vadd.xlane.f32.xlu0 %v1619
      %v1621 = vpop.xlane.xlu0 %1620
      %v1622 = vadd.f32 %v1487, %v1489
      %1623 = vadd.xlane.f32.xlu0 %v1622
      %v1624 = vpop.xlane.xlu0 %1623
      %v1625 = vadd.f32 %v1491, %v1493
      %1626 = vadd.xlane.f32.xlu0 %v1625
      %v1627 = vpop.xlane.xlu0 %1626
      %v1628 = vadd.f32 %v1495, %v1497
      %1629 = vadd.xlane.f32.xlu0 %v1628
      %v1630 = vpop.xlane.xlu0 %1629
      %v1631 = vadd.f32 %v1499, %v1501
      %1632 = vadd.xlane.f32.xlu0 %v1631
      %v1633 = vpop.xlane.xlu0 %1632
      %v1634 = vadd.f32 %v1503, %v1505
      %1635 = vadd.xlane.f32.xlu0 %v1634
      %v1636 = vpop.xlane.xlu0 %1635
      %v1637 = vadd.f32 %v1507, %v1509
      %1638 = vadd.xlane.f32.xlu0 %v1637
      %v1639 = vpop.xlane.xlu0 %1638
      %v1640 = vadd.f32 %v1511, %v1513
      %1641 = vadd.xlane.f32.xlu0 %v1640
      %v1642 = vpop.xlane.xlu0 %1641
      %v1643 = vadd.f32 %v1515, %v1517
      %1644 = vadd.xlane.f32.xlu0 %v1643
      %v1645 = vpop.xlane.xlu0 %1644
      %v1646 = vadd.f32 %v1518, %v1552
      %v1647 = vadd.f32 %v1519, %v1555
      %v1648 = vadd.f32 %v1520, %v1558
      %v1649 = vadd.f32 %v1521, %v1561
      %v1650 = vadd.f32 %v1522, %v1564
      %v1651 = vadd.f32 %v1523, %v1567
      %v1652 = vadd.f32 %v1524, %v1570
      %v1653 = vadd.f32 %v1525, %v1573
      %v1654 = vadd.f32 %v1526, %v1576
      %v1655 = vadd.f32 %v1527, %v1579
      %v1656 = vadd.f32 %v1528, %v1582
      %v1657 = vadd.f32 %v1529, %v1585
      %v1658 = vadd.f32 %v1530, %v1588
      %v1659 = vadd.f32 %v1531, %v1591
      %v1660 = vadd.f32 %v1532, %v1594
      %v1661 = vadd.f32 %v1533, %v1597
      %v1662 = vadd.f32 %v1534, %v1600
      %v1663 = vadd.f32 %v1535, %v1603
      %v1664 = vadd.f32 %v1536, %v1606
      %v1665 = vadd.f32 %v1537, %v1609
      %v1666 = vadd.f32 %v1538, %v1612
      %v1667 = vadd.f32 %v1539, %v1615
      %v1668 = vadd.f32 %v1540, %v1618
      %v1669 = vadd.f32 %v1541, %v1621
      %v1670 = vadd.f32 %v1542, %v1624
      %v1671 = vadd.f32 %v1543, %v1627
      %v1672 = vadd.f32 %v1544, %v1630
      %v1673 = vadd.f32 %v1545, %v1633
      %v1674 = vadd.f32 %v1546, %v1636
      %v1675 = vadd.f32 %v1547, %v1639
      %v1676 = vadd.f32 %v1548, %v1642
      %v1677 = vadd.f32 %v1549, %v1645
      %vm1678 = vcmask 7168
      %1679 = vst.msk [vmem:[#allocation3] sm:$0xff] %vm1678, %v1646
      %1680 = vst.msk [vmem:[#allocation3 + $0x8] sm:$0xff] %vm1678, %v1647
      %1681 = vst.msk [vmem:[#allocation3 + $0x10] sm:$0xff] %vm1678, %v1648
      %1682 = vst.msk [vmem:[#allocation3 + $0x18] sm:$0xff] %vm1678, %v1649
      %1683 = vst.msk [vmem:[#allocation3 + $0x20] sm:$0xff] %vm1678, %v1650
      %1684 = vst.msk [vmem:[#allocation3 + $0x28] sm:$0xff] %vm1678, %v1651
      %1685 = vst.msk [vmem:[#allocation3 + $0x30] sm:$0xff] %vm1678, %v1652
      %1686 = vst.msk [vmem:[#allocation3 + $0x38] sm:$0xff] %vm1678, %v1653
      %1687 = vst.msk [vmem:[#allocation3 + $0x40] sm:$0xff] %vm1678, %v1654
      %1688 = vst.msk [vmem:[#allocation3 + $0x48] sm:$0xff] %vm1678, %v1655
      %1689 = vst.msk [vmem:[#allocation3 + $0x50] sm:$0xff] %vm1678, %v1656
      %1690 = vst.msk [vmem:[#allocation3 + $0x58] sm:$0xff] %vm1678, %v1657
      %1691 = vst.msk [vmem:[#allocation3 + $0x60] sm:$0xff] %vm1678, %v1658
      %1692 = vst.msk [vmem:[#allocation3 + $0x68] sm:$0xff] %vm1678, %v1659
      %1693 = vst.msk [vmem:[#allocation3 + $0x70] sm:$0xff] %vm1678, %v1660
      %1694 = vst.msk [vmem:[#allocation3 + $0x78] sm:$0xff] %vm1678, %v1661
      %1695 = vst.msk [vmem:[#allocation3 + $0x80] sm:$0xff] %vm1678, %v1662
      %1696 = vst.msk [vmem:[#allocation3 + $0x88] sm:$0xff] %vm1678, %v1663
      %1697 = vst.msk [vmem:[#allocation3 + $0x90] sm:$0xff] %vm1678, %v1664
      %1698 = vst.msk [vmem:[#allocation3 + $0x98] sm:$0xff] %vm1678, %v1665
      %1699 = vst.msk [vmem:[#allocation3 + $0xa0] sm:$0xff] %vm1678, %v1666
      %1700 = vst.msk [vmem:[#allocation3 + $0xa8] sm:$0xff] %vm1678, %v1667
      %1701 = vst.msk [vmem:[#allocation3 + $0xb0] sm:$0xff] %vm1678, %v1668
      %1702 = vst.msk [vmem:[#allocation3 + $0xb8] sm:$0xff] %vm1678, %v1669
      %1703 = vst.msk [vmem:[#allocation3 + $0xc0] sm:$0xff] %vm1678, %v1670
      %1704 = vst.msk [vmem:[#allocation3 + $0xc8] sm:$0xff] %vm1678, %v1671
      %1705 = vst.msk [vmem:[#allocation3 + $0xd0] sm:$0xff] %vm1678, %v1672
      %1706 = vst.msk [vmem:[#allocation3 + $0xd8] sm:$0xff] %vm1678, %v1673
      %1707 = vst.msk [vmem:[#allocation3 + $0xe0] sm:$0xff] %vm1678, %v1674
      %1708 = vst.msk [vmem:[#allocation3 + $0xe8] sm:$0xff] %vm1678, %v1675
      %1709 = vst.msk [vmem:[#allocation3 + $0xf0] sm:$0xff] %vm1678, %v1676
      %1710 = vst.msk [vmem:[#allocation3 + $0xf8] sm:$0xff] %vm1678, %v1677
      %v1711 = vld [vmem:[#allocation4] sm:$0xff]
      %v1712 = vld [vmem:[#allocation4 + $0x8] sm:$0xff]
      %v1713 = vld [vmem:[#allocation4 + $0x10] sm:$0xff]
      %v1714 = vld [vmem:[#allocation4 + $0x18] sm:$0xff]
      %v1715 = vld [vmem:[#allocation4 + $0x20] sm:$0xff]
      %v1716 = vld [vmem:[#allocation4 + $0x28] sm:$0xff]
      %v1717 = vld [vmem:[#allocation4 + $0x30] sm:$0xff]
      %v1718 = vld [vmem:[#allocation4 + $0x38] sm:$0xff]
      %v1719 = vld [vmem:[#allocation4 + $0x40] sm:$0xff]
      %v1720 = vld [vmem:[#allocation4 + $0x48] sm:$0xff]
      %v1721 = vld [vmem:[#allocation4 + $0x50] sm:$0xff]
      %v1722 = vld [vmem:[#allocation4 + $0x58] sm:$0xff]
      %v1723 = vld [vmem:[#allocation4 + $0x60] sm:$0xff]
      %v1724 = vld [vmem:[#allocation4 + $0x68] sm:$0xff]
      %v1725 = vld [vmem:[#allocation4 + $0x70] sm:$0xff]
      %v1726 = vld [vmem:[#allocation4 + $0x78] sm:$0xff]
      %v1727 = vld [vmem:[#allocation4 + $0x80] sm:$0xff]
      %v1728 = vld [vmem:[#allocation4 + $0x88] sm:$0xff]
      %v1729 = vld [vmem:[#allocation4 + $0x90] sm:$0xff]
      %v1730 = vld [vmem:[#allocation4 + $0x98] sm:$0xff]
      %v1731 = vld [vmem:[#allocation4 + $0xa0] sm:$0xff]
      %v1732 = vld [vmem:[#allocation4 + $0xa8] sm:$0xff]
      %v1733 = vld [vmem:[#allocation4 + $0xb0] sm:$0xff]
      %v1734 = vld [vmem:[#allocation4 + $0xb8] sm:$0xff]
      %v1735 = vld [vmem:[#allocation4 + $0xc0] sm:$0xff]
      %v1736 = vld [vmem:[#allocation4 + $0xc8] sm:$0xff]
      %v1737 = vld [vmem:[#allocation4 + $0xd0] sm:$0xff]
      %v1738 = vld [vmem:[#allocation4 + $0xd8] sm:$0xff]
      %v1739 = vld [vmem:[#allocation4 + $0xe0] sm:$0xff]
      %v1740 = vld [vmem:[#allocation4 + $0xe8] sm:$0xff]
      %v1741 = vld [vmem:[#allocation4 + $0xf0] sm:$0xff]
      %v1742 = vld [vmem:[#allocation4 + $0xf8] sm:$0xff]
      %1743 = vmatprep.subr.mxu0 0.0
      %1744 = vmatpush1.msra.mxu0 %v812
      %1745 = vmatprep.subr.mxu0 0.0
      %1746 = vmatpush1.msra.mxu0 %v813
      %1747 = vmatprep.subr.mxu0 0.0
      %1748 = vmatpush1.msra.mxu0 %v814
      %1749 = vmatprep.subr.mxu0 0.0
      %1750 = vmatpush1.msra.mxu0 %v815
      %1751 = vmatprep.subr.mxu0 0.0
      %1752 = vmatpush1.msra.mxu0 %v816
      %1753 = vmatprep.subr.mxu0 0.0
      %1754 = vmatpush1.msra.mxu0 %v817
      %1755 = vmatprep.subr.mxu0 0.0
      %1756 = vmatpush1.msra.mxu0 %v818
      %1757 = vmatprep.subr.mxu0 0.0
      %1758 = vmatpush1.msra.mxu0 %v819
      %1759 = vmatprep.subr.mxu0 0.0
      %1760 = vmatpush1.msra.mxu0 %v820
      %1761 = vmatprep.subr.mxu0 0.0
      %1762 = vmatpush1.msra.mxu0 %v821
      %1763 = vmatprep.subr.mxu0 0.0
      %1764 = vmatpush1.msra.mxu0 %v822
      %1765 = vmatprep.subr.mxu0 0.0
      %1766 = vmatpush1.msra.mxu0 %v823
      %1767 = vmatprep.subr.mxu0 0.0
      %1768 = vmatpush1.msra.mxu0 %v824
      %1769 = vmatprep.subr.mxu0 0.0
      %1770 = vmatpush1.msra.mxu0 %v825
      %1771 = vmatprep.subr.mxu0 0.0
      %1772 = vmatpush1.msra.mxu0 %v826
      %1773 = vmatprep.subr.mxu0 0.0
      %1774 = vmatpush1.msra.mxu0 %v827
      %1775 = vmatprep.subr.mxu0 0.0
      %1776 = vmatpush1.msra.mxu0 %v828
      %1777 = vmatprep.subr.mxu0 0.0
      %1778 = vmatpush1.msra.mxu0 %v829
      %1779 = vmatprep.subr.mxu0 0.0
      %1780 = vmatpush1.msra.mxu0 %v830
      %1781 = vmatprep.subr.mxu0 0.0
      %1782 = vmatpush1.msra.mxu0 %v831
      %1783 = vmatprep.subr.mxu0 0.0
      %1784 = vmatpush1.msra.mxu0 %v832
      %1785 = vmatprep.subr.mxu0 0.0
      %1786 = vmatpush1.msra.mxu0 %v833
      %1787 = vmatprep.subr.mxu0 0.0
      %1788 = vmatpush1.msra.mxu0 %v834
      %1789 = vmatprep.subr.mxu0 0.0
      %1790 = vmatpush1.msra.mxu0 %v835
      %1791 = vmatprep.subr.mxu0 0.0
      %1792 = vmatpush1.msra.mxu0 %v836
      %1793 = vmatprep.subr.mxu0 0.0
      %1794 = vmatpush1.msra.mxu0 %v837
      %1795 = vmatprep.subr.mxu0 0.0
      %1796 = vmatpush1.msra.mxu0 %v838
      %1797 = vmatprep.subr.mxu0 0.0
      %1798 = vmatpush1.msra.mxu0 %v839
      %1799 = vmatprep.subr.mxu0 0.0
      %1800 = vmatpush1.msra.mxu0 %v840
      %1801 = vmatprep.subr.mxu0 0.0
      %1802 = vmatpush1.msra.mxu0 %v841
      %1803 = vmatprep.subr.mxu0 0.0
      %1804 = vmatpush1.msra.mxu0 %v842
      %1805 = vmatprep.subr.mxu0 0.0
      %1806 = vmatpush1.msra.mxu0 %v843
      %1807 = vmatprep.mubr.f32.mxu0 %v1393
      %1808 = vmatmul.mubr.f32.gmra.mrb[0].mxu0 %v1391
      %v1809 = vpop.f32.mrb[0].mxu0
      %v1810 = vadd.f32 0.0, %v1809
      %v1811 = vpop.f32.mrb[0].mxu0
      %1812 = vmatprep.mubr.f32.mxu0 %v1397
      %1813 = vmatmul.mubr.f32.gmra.mrb[0].mxu0 %v1395
      %v1814 = vpop.f32.mrb[0].mxu0
      %v1815 = vadd.f32 0.0, %v1814
      %v1816 = vpop.f32.mrb[0].mxu0
      %1817 = vmatprep.mubr.f32.mxu0 %v1401
      %1818 = vmatmul.mubr.f32.gmra.mrb[0].mxu0 %v1399
      %v1819 = vpop.f32.mrb[0].mxu0
      %v1820 = vadd.f32 0.0, %v1819
      %v1821 = vpop.f32.mrb[0].mxu0
      %1822 = vmatprep.mubr.f32.mxu0 %v1405
      %1823 = vmatmul.mubr.f32.gmra.mrb[0].mxu0 %v1403
      %v1824 = vpop.f32.mrb[0].mxu0
      %v1825 = vadd.f32 0.0, %v1824
      %v1826 = vpop.f32.mrb[0].mxu0
      %1827 = vmatprep.mubr.f32.mxu0 %v1409
      %1828 = vmatmul.mubr.f32.gmra.mrb[0].mxu0 %v1407
      %v1829 = vpop.f32.mrb[0].mxu0
      %v1830 = vadd.f32 0.0, %v1829
      %v1831 = vpop.f32.mrb[0].mxu0
      %1832 = vmatprep.mubr.f32.mxu0 %v1413
      %1833 = vmatmul.mubr.f32.gmra.mrb[0].mxu0 %v1411
      %v1834 = vpop.f32.mrb[0].mxu0
      %v1835 = vadd.f32 0.0, %v1834
      %v1836 = vpop.f32.mrb[0].mxu0
      %1837 = vmatprep.mubr.f32.mxu0 %v1417
      %1838 = vmatmul.mubr.f32.gmra.mrb[0].mxu0 %v1415
      %v1839 = vpop.f32.mrb[0].mxu0
      %v1840 = vadd.f32 0.0, %v1839
      %v1841 = vpop.f32.mrb[0].mxu0
      %1842 = vmatprep.mubr.f32.mxu0 %v1421
      %1843 = vmatmul.mubr.f32.gmra.mrb[0].mxu0 %v1419
      %v1844 = vpop.f32.mrb[0].mxu0
      %v1845 = vadd.f32 0.0, %v1844
      %v1846 = vpop.f32.mrb[0].mxu0
      %1847 = vmatprep.mubr.f32.mxu0 %v1425
      %1848 = vmatmul.mubr.f32.gmra.mrb[0].mxu0 %v1423
      %v1849 = vpop.f32.mrb[0].mxu0
      %v1850 = vadd.f32 0.0, %v1849
      %v1851 = vpop.f32.mrb[0].mxu0
      %1852 = vmatprep.mubr.f32.mxu0 %v1429
      %1853 = vmatmul.mubr.f32.gmra.mrb[0].mxu0 %v1427
      %v1854 = vpop.f32.mrb[0].mxu0
      %v1855 = vadd.f32 0.0, %v1854
      %v1856 = vpop.f32.mrb[0].mxu0
      %1857 = vmatprep.mubr.f32.mxu0 %v1433
      %1858 = vmatmul.mubr.f32.gmra.mrb[0].mxu0 %v1431
      %v1859 = vpop.f32.mrb[0].mxu0
      %v1860 = vadd.f32 0.0, %v1859
      %v1861 = vpop.f32.mrb[0].mxu0
      %1862 = vmatprep.mubr.f32.mxu0 %v1437
      %1863 = vmatmul.mubr.f32.gmra.mrb[0].mxu0 %v1435
      %v1864 = vpop.f32.mrb[0].mxu0
      %v1865 = vadd.f32 0.0, %v1864
      %v1866 = vpop.f32.mrb[0].mxu0
      %1867 = vmatprep.mubr.f32.mxu0 %v1441
      %1868 = vmatmul.mubr.f32.gmra.mrb[0].mxu0 %v1439
      %v1869 = vpop.f32.mrb[0].mxu0
      %v1870 = vadd.f32 0.0, %v1869
      %v1871 = vpop.f32.mrb[0].mxu0
      %1872 = vmatprep.mubr.f32.mxu0 %v1445
      %1873 = vmatmul.mubr.f32.gmra.mrb[0].mxu0 %v1443
      %v1874 = vpop.f32.mrb[0].mxu0
      %v1875 = vadd.f32 0.0, %v1874
      %v1876 = vpop.f32.mrb[0].mxu0
      %1877 = vmatprep.mubr.f32.mxu0 %v1449
      %1878 = vmatmul.mubr.f32.gmra.mrb[0].mxu0 %v1447
      %v1879 = vpop.f32.mrb[0].mxu0
      %v1880 = vadd.f32 0.0, %v1879
      %v1881 = vpop.f32.mrb[0].mxu0
      %1882 = vmatprep.mubr.f32.mxu0 %v1453
      %1883 = vmatmul.mubr.f32.gmra.mrb[0].mxu0 %v1451
      %v1884 = vpop.f32.mrb[0].mxu0
      %v1885 = vadd.f32 0.0, %v1884
      %v1886 = vpop.f32.mrb[0].mxu0
      %1887 = vmatprep.mubr.f32.mxu0 %v1457
      %1888 = vmatmul.mubr.f32.gmra.mrb[0].mxu0 %v1455
      %v1889 = vpop.f32.mrb[0].mxu0
      %v1890 = vadd.f32 0.0, %v1889
      %v1891 = vpop.f32.mrb[0].mxu0
      %1892 = vmatprep.mubr.f32.mxu0 %v1461
      %1893 = vmatmul.mubr.f32.gmra.mrb[0].mxu0 %v1459
      %v1894 = vpop.f32.mrb[0].mxu0
      %v1895 = vadd.f32 0.0, %v1894
      %v1896 = vpop.f32.mrb[0].mxu0
      %1897 = vmatprep.mubr.f32.mxu0 %v1465
      %1898 = vmatmul.mubr.f32.gmra.mrb[0].mxu0 %v1463
      %v1899 = vpop.f32.mrb[0].mxu0
      %v1900 = vadd.f32 0.0, %v1899
      %v1901 = vpop.f32.mrb[0].mxu0
      %1902 = vmatprep.mubr.f32.mxu0 %v1469
      %1903 = vmatmul.mubr.f32.gmra.mrb[0].mxu0 %v1467
      %v1904 = vpop.f32.mrb[0].mxu0
      %v1905 = vadd.f32 0.0, %v1904
      %v1906 = vpop.f32.mrb[0].mxu0
      %1907 = vmatprep.mubr.f32.mxu0 %v1473
      %1908 = vmatmul.mubr.f32.gmra.mrb[0].mxu0 %v1471
      %v1909 = vpop.f32.mrb[0].mxu0
      %v1910 = vadd.f32 0.0, %v1909
      %v1911 = vpop.f32.mrb[0].mxu0
      %1912 = vmatprep.mubr.f32.mxu0 %v1477
      %1913 = vmatmul.mubr.f32.gmra.mrb[0].mxu0 %v1475
      %v1914 = vpop.f32.mrb[0].mxu0
      %v1915 = vadd.f32 0.0, %v1914
      %v1916 = vpop.f32.mrb[0].mxu0
      %1917 = vmatprep.mubr.f32.mxu0 %v1481
      %1918 = vmatmul.mubr.f32.gmra.mrb[0].mxu0 %v1479
      %v1919 = vpop.f32.mrb[0].mxu0
      %v1920 = vadd.f32 0.0, %v1919
      %v1921 = vpop.f32.mrb[0].mxu0
      %1922 = vmatprep.mubr.f32.mxu0 %v1485
      %1923 = vmatmul.mubr.f32.gmra.mrb[0].mxu0 %v1483
      %v1924 = vpop.f32.mrb[0].mxu0
      %v1925 = vadd.f32 0.0, %v1924
      %v1926 = vpop.f32.mrb[0].mxu0
      %1927 = vmatprep.mubr.f32.mxu0 %v1489
      %1928 = vmatmul.mubr.f32.gmra.mrb[0].mxu0 %v1487
      %v1929 = vpop.f32.mrb[0].mxu0
      %v1930 = vadd.f32 0.0, %v1929
      %v1931 = vpop.f32.mrb[0].mxu0
      %1932 = vmatprep.mubr.f32.mxu0 %v1493
      %1933 = vmatmul.mubr.f32.gmra.mrb[0].mxu0 %v1491
      %v1934 = vpop.f32.mrb[0].mxu0
      %v1935 = vadd.f32 0.0, %v1934
      %v1936 = vpop.f32.mrb[0].mxu0
      %1937 = vmatprep.mubr.f32.mxu0 %v1497
      %1938 = vmatmul.mubr.f32.gmra.mrb[0].mxu0 %v1495
      %v1939 = vpop.f32.mrb[0].mxu0
      %v1940 = vadd.f32 0.0, %v1939
      %v1941 = vpop.f32.mrb[0].mxu0
      %1942 = vmatprep.mubr.f32.mxu0 %v1501
      %1943 = vmatmul.mubr.f32.gmra.mrb[0].mxu0 %v1499
      %v1944 = vpop.f32.mrb[0].mxu0
      %v1945 = vadd.f32 0.0, %v1944
      %v1946 = vpop.f32.mrb[0].mxu0
      %1947 = vmatprep.mubr.f32.mxu0 %v1505
      %1948 = vmatmul.mubr.f32.gmra.mrb[0].mxu0 %v1503
      %v1949 = vpop.f32.mrb[0].mxu0
      %v1950 = vadd.f32 0.0, %v1949
      %v1951 = vpop.f32.mrb[0].mxu0
      %1952 = vmatprep.mubr.f32.mxu0 %v1509
      %1953 = vmatmul.mubr.f32.gmra.mrb[0].mxu0 %v1507
      %v1954 = vpop.f32.mrb[0].mxu0
      %v1955 = vadd.f32 0.0, %v1954
      %v1956 = vpop.f32.mrb[0].mxu0
      %1957 = vmatprep.mubr.f32.mxu0 %v1513
      %1958 = vmatmul.mubr.f32.gmra.mrb[0].mxu0 %v1511
      %v1959 = vpop.f32.mrb[0].mxu0
      %v1960 = vadd.f32 0.0, %v1959
      %v1961 = vpop.f32.mrb[0].mxu0
      %1962 = vmatprep.mubr.f32.mxu0 %v1517
      %1963 = vmatmul.mubr.f32.gmra.mrb[0].mxu0 %v1515
      %v1964 = vpop.f32.mrb[0].mxu0
      %v1965 = vadd.f32 0.0, %v1964
      %v1966 = vpop.f32.mrb[0].mxu0
      %1967 = vdwg.mxu0
      %v1968 = vadd.f32 %v1711, %v1810
      %v1969 = vadd.f32 %v1712, %v1815
      %v1970 = vadd.f32 %v1713, %v1820
      %v1971 = vadd.f32 %v1714, %v1825
      %v1972 = vadd.f32 %v1715, %v1830
      %v1973 = vadd.f32 %v1716, %v1835
      %v1974 = vadd.f32 %v1717, %v1840
      %v1975 = vadd.f32 %v1718, %v1845
      %v1976 = vadd.f32 %v1719, %v1850
      %v1977 = vadd.f32 %v1720, %v1855
      %v1978 = vadd.f32 %v1721, %v1860
      %v1979 = vadd.f32 %v1722, %v1865
      %v1980 = vadd.f32 %v1723, %v1870
      %v1981 = vadd.f32 %v1724, %v1875
      %v1982 = vadd.f32 %v1725, %v1880
      %v1983 = vadd.f32 %v1726, %v1885
      %v1984 = vadd.f32 %v1727, %v1890
      %v1985 = vadd.f32 %v1728, %v1895
      %v1986 = vadd.f32 %v1729, %v1900
      %v1987 = vadd.f32 %v1730, %v1905
      %v1988 = vadd.f32 %v1731, %v1910
      %v1989 = vadd.f32 %v1732, %v1915
      %v1990 = vadd.f32 %v1733, %v1920
      %v1991 = vadd.f32 %v1734, %v1925
      %v1992 = vadd.f32 %v1735, %v1930
      %v1993 = vadd.f32 %v1736, %v1935
      %v1994 = vadd.f32 %v1737, %v1940
      %v1995 = vadd.f32 %v1738, %v1945
      %v1996 = vadd.f32 %v1739, %v1950
      %v1997 = vadd.f32 %v1740, %v1955
      %v1998 = vadd.f32 %v1741, %v1960
      %v1999 = vadd.f32 %v1742, %v1965
      %vm2000 = vcmask 523264
      %2001 = vst.msk [vmem:[#allocation4] sm:$0xff] %vm2000, %v1968
      %2002 = vst.msk [vmem:[#allocation4 + $0x8] sm:$0xff] %vm2000, %v1969
      %2003 = vst.msk [vmem:[#allocation4 + $0x10] sm:$0xff] %vm2000, %v1970
      %2004 = vst.msk [vmem:[#allocation4 + $0x18] sm:$0xff] %vm2000, %v1971
      %2005 = vst.msk [vmem:[#allocation4 + $0x20] sm:$0xff] %vm2000, %v1972
      %2006 = vst.msk [vmem:[#allocation4 + $0x28] sm:$0xff] %vm2000, %v1973
      %2007 = vst.msk [vmem:[#allocation4 + $0x30] sm:$0xff] %vm2000, %v1974
      %2008 = vst.msk [vmem:[#allocation4 + $0x38] sm:$0xff] %vm2000, %v1975
      %2009 = vst.msk [vmem:[#allocation4 + $0x40] sm:$0xff] %vm2000, %v1976
      %2010 = vst.msk [vmem:[#allocation4 + $0x48] sm:$0xff] %vm2000, %v1977
      %2011 = vst.msk [vmem:[#allocation4 + $0x50] sm:$0xff] %vm2000, %v1978
      %2012 = vst.msk [vmem:[#allocation4 + $0x58] sm:$0xff] %vm2000, %v1979
      %2013 = vst.msk [vmem:[#allocation4 + $0x60] sm:$0xff] %vm2000, %v1980
      %2014 = vst.msk [vmem:[#allocation4 + $0x68] sm:$0xff] %vm2000, %v1981
      %2015 = vst.msk [vmem:[#allocation4 + $0x70] sm:$0xff] %vm2000, %v1982
      %2016 = vst.msk [vmem:[#allocation4 + $0x78] sm:$0xff] %vm2000, %v1983
      %2017 = vst.msk [vmem:[#allocation4 + $0x80] sm:$0xff] %vm2000, %v1984
      %2018 = vst.msk [vmem:[#allocation4 + $0x88] sm:$0xff] %vm2000, %v1985
      %2019 = vst.msk [vmem:[#allocation4 + $0x90] sm:$0xff] %vm2000, %v1986
      %2020 = vst.msk [vmem:[#allocation4 + $0x98] sm:$0xff] %vm2000, %v1987
      %2021 = vst.msk [vmem:[#allocation4 + $0xa0] sm:$0xff] %vm2000, %v1988
      %2022 = vst.msk [vmem:[#allocation4 + $0xa8] sm:$0xff] %vm2000, %v1989
      %2023 = vst.msk [vmem:[#allocation4 + $0xb0] sm:$0xff] %vm2000, %v1990
      %2024 = vst.msk [vmem:[#allocation4 + $0xb8] sm:$0xff] %vm2000, %v1991
      %2025 = vst.msk [vmem:[#allocation4 + $0xc0] sm:$0xff] %vm2000, %v1992
      %2026 = vst.msk [vmem:[#allocation4 + $0xc8] sm:$0xff] %vm2000, %v1993
      %2027 = vst.msk [vmem:[#allocation4 + $0xd0] sm:$0xff] %vm2000, %v1994
      %2028 = vst.msk [vmem:[#allocation4 + $0xd8] sm:$0xff] %vm2000, %v1995
      %2029 = vst.msk [vmem:[#allocation4 + $0xe0] sm:$0xff] %vm2000, %v1996
      %2030 = vst.msk [vmem:[#allocation4 + $0xe8] sm:$0xff] %vm2000, %v1997
      %2031 = vst.msk [vmem:[#allocation4 + $0xf0] sm:$0xff] %vm2000, %v1998
      %2032 = vst.msk [vmem:[#allocation4 + $0xf8] sm:$0xff] %vm2000, %v1999
      // Predicated region
      $region41: #{tpu_custom_call.1} parent=35 // pred_check
        %p2033 = pneg %p316
      $region42: #{tpu_custom_call.1} parent=35 // pred_check_branch
        %2035 = sbr.rel (%p2033) target = $region44
      $region43: #{tpu_custom_call.1} parent=35 // pred_region
        %v2036 = vld [vmem:[#allocation4] sm:$0xff]
        %v2037 = vld [vmem:[#allocation4 + $0x8] sm:$0xff]
        %v2038 = vld [vmem:[#allocation4 + $0x10] sm:$0xff]
        %v2039 = vld [vmem:[#allocation4 + $0x18] sm:$0xff]
        %v2040 = vld [vmem:[#allocation4 + $0x20] sm:$0xff]
        %v2041 = vld [vmem:[#allocation4 + $0x28] sm:$0xff]
        %v2042 = vld [vmem:[#allocation4 + $0x30] sm:$0xff]
        %v2043 = vld [vmem:[#allocation4 + $0x38] sm:$0xff]
        %v2044 = vld [vmem:[#allocation4 + $0x40] sm:$0xff]
        %v2045 = vld [vmem:[#allocation4 + $0x48] sm:$0xff]
        %v2046 = vld [vmem:[#allocation4 + $0x50] sm:$0xff]
        %v2047 = vld [vmem:[#allocation4 + $0x58] sm:$0xff]
        %v2048 = vld [vmem:[#allocation4 + $0x60] sm:$0xff]
        %v2049 = vld [vmem:[#allocation4 + $0x68] sm:$0xff]
        %v2050 = vld [vmem:[#allocation4 + $0x70] sm:$0xff]
        %v2051 = vld [vmem:[#allocation4 + $0x78] sm:$0xff]
        %v2052 = vld [vmem:[#allocation4 + $0x80] sm:$0xff]
        %v2053 = vld [vmem:[#allocation4 + $0x88] sm:$0xff]
        %v2054 = vld [vmem:[#allocation4 + $0x90] sm:$0xff]
        %v2055 = vld [vmem:[#allocation4 + $0x98] sm:$0xff]
        %v2056 = vld [vmem:[#allocation4 + $0xa0] sm:$0xff]
        %v2057 = vld [vmem:[#allocation4 + $0xa8] sm:$0xff]
        %v2058 = vld [vmem:[#allocation4 + $0xb0] sm:$0xff]
        %v2059 = vld [vmem:[#allocation4 + $0xb8] sm:$0xff]
        %v2060 = vld [vmem:[#allocation4 + $0xc0] sm:$0xff]
        %v2061 = vld [vmem:[#allocation4 + $0xc8] sm:$0xff]
        %v2062 = vld [vmem:[#allocation4 + $0xd0] sm:$0xff]
        %v2063 = vld [vmem:[#allocation4 + $0xd8] sm:$0xff]
        %v2064 = vld [vmem:[#allocation4 + $0xe0] sm:$0xff]
        %v2065 = vld [vmem:[#allocation4 + $0xe8] sm:$0xff]
        %v2066 = vld [vmem:[#allocation4 + $0xf0] sm:$0xff]
        %v2067 = vld [vmem:[#allocation4 + $0xf8] sm:$0xff]
        %v2068 = vld [vmem:[#allocation3] sm:$0xff]
        %v2069 = vld [vmem:[#allocation3 + $0x8] sm:$0xff]
        %v2070 = vld [vmem:[#allocation3 + $0x10] sm:$0xff]
        %v2071 = vld [vmem:[#allocation3 + $0x18] sm:$0xff]
        %v2072 = vld [vmem:[#allocation3 + $0x20] sm:$0xff]
        %v2073 = vld [vmem:[#allocation3 + $0x28] sm:$0xff]
        %v2074 = vld [vmem:[#allocation3 + $0x30] sm:$0xff]
        %v2075 = vld [vmem:[#allocation3 + $0x38] sm:$0xff]
        %v2076 = vld [vmem:[#allocation3 + $0x40] sm:$0xff]
        %v2077 = vld [vmem:[#allocation3 + $0x48] sm:$0xff]
        %v2078 = vld [vmem:[#allocation3 + $0x50] sm:$0xff]
        %v2079 = vld [vmem:[#allocation3 + $0x58] sm:$0xff]
        %v2080 = vld [vmem:[#allocation3 + $0x60] sm:$0xff]
        %v2081 = vld [vmem:[#allocation3 + $0x68] sm:$0xff]
        %v2082 = vld [vmem:[#allocation3 + $0x70] sm:$0xff]
        %v2083 = vld [vmem:[#allocation3 + $0x78] sm:$0xff]
        %v2084 = vld [vmem:[#allocation3 + $0x80] sm:$0xff]
        %v2085 = vld [vmem:[#allocation3 + $0x88] sm:$0xff]
        %v2086 = vld [vmem:[#allocation3 + $0x90] sm:$0xff]
        %v2087 = vld [vmem:[#allocation3 + $0x98] sm:$0xff]
        %v2088 = vld [vmem:[#allocation3 + $0xa0] sm:$0xff]
        %v2089 = vld [vmem:[#allocation3 + $0xa8] sm:$0xff]
        %v2090 = vld [vmem:[#allocation3 + $0xb0] sm:$0xff]
        %v2091 = vld [vmem:[#allocation3 + $0xb8] sm:$0xff]
        %v2092 = vld [vmem:[#allocation3 + $0xc0] sm:$0xff]
        %v2093 = vld [vmem:[#allocation3 + $0xc8] sm:$0xff]
        %v2094 = vld [vmem:[#allocation3 + $0xd0] sm:$0xff]
        %v2095 = vld [vmem:[#allocation3 + $0xd8] sm:$0xff]
        %v2096 = vld [vmem:[#allocation3 + $0xe0] sm:$0xff]
        %v2097 = vld [vmem:[#allocation3 + $0xe8] sm:$0xff]
        %v2098 = vld [vmem:[#allocation3 + $0xf0] sm:$0xff]
        %v2099 = vld [vmem:[#allocation3 + $0xf8] sm:$0xff]
        %2101 = vset.pattern.permute.xlu0 0
        %2102 = vperm.xlu0 %2101, %v2068
        %v2103 = vpop.permute.xlu0 %2102
        %2106 = vset.pattern.permute.xlu0 0
        %2107 = vperm.xlu0 %2106, %v2069
        %v2108 = vpop.permute.xlu0 %2107
        %2111 = vset.pattern.permute.xlu0 0
        %2112 = vperm.xlu0 %2111, %v2070
        %v2113 = vpop.permute.xlu0 %2112
        %2116 = vset.pattern.permute.xlu0 0
        %2117 = vperm.xlu0 %2116, %v2071
        %v2118 = vpop.permute.xlu0 %2117
        %2121 = vset.pattern.permute.xlu0 0
        %2122 = vperm.xlu0 %2121, %v2072
        %v2123 = vpop.permute.xlu0 %2122
        %2126 = vset.pattern.permute.xlu0 0
        %2127 = vperm.xlu0 %2126, %v2073
        %v2128 = vpop.permute.xlu0 %2127
        %2131 = vset.pattern.permute.xlu0 0
        %2132 = vperm.xlu0 %2131, %v2074
        %v2133 = vpop.permute.xlu0 %2132
        %2136 = vset.pattern.permute.xlu0 0
        %2137 = vperm.xlu0 %2136, %v2075
        %v2138 = vpop.permute.xlu0 %2137
        %2141 = vset.pattern.permute.xlu0 0
        %2142 = vperm.xlu0 %2141, %v2076
        %v2143 = vpop.permute.xlu0 %2142
        %2146 = vset.pattern.permute.xlu0 0
        %2147 = vperm.xlu0 %2146, %v2077
        %v2148 = vpop.permute.xlu0 %2147
        %2151 = vset.pattern.permute.xlu0 0
        %2152 = vperm.xlu0 %2151, %v2078
        %v2153 = vpop.permute.xlu0 %2152
        %2156 = vset.pattern.permute.xlu0 0
        %2157 = vperm.xlu0 %2156, %v2079
        %v2158 = vpop.permute.xlu0 %2157
        %2161 = vset.pattern.permute.xlu0 0
        %2162 = vperm.xlu0 %2161, %v2080
        %v2163 = vpop.permute.xlu0 %2162
        %2166 = vset.pattern.permute.xlu0 0
        %2167 = vperm.xlu0 %2166, %v2081
        %v2168 = vpop.permute.xlu0 %2167
        %2171 = vset.pattern.permute.xlu0 0
        %2172 = vperm.xlu0 %2171, %v2082
        %v2173 = vpop.permute.xlu0 %2172
        %2176 = vset.pattern.permute.xlu0 0
        %2177 = vperm.xlu0 %2176, %v2083
        %v2178 = vpop.permute.xlu0 %2177
        %2181 = vset.pattern.permute.xlu0 0
        %2182 = vperm.xlu0 %2181, %v2084
        %v2183 = vpop.permute.xlu0 %2182
        %2186 = vset.pattern.permute.xlu0 0
        %2187 = vperm.xlu0 %2186, %v2085
        %v2188 = vpop.permute.xlu0 %2187
        %2191 = vset.pattern.permute.xlu0 0
        %2192 = vperm.xlu0 %2191, %v2086
        %v2193 = vpop.permute.xlu0 %2192
        %2196 = vset.pattern.permute.xlu0 0
        %2197 = vperm.xlu0 %2196, %v2087
        %v2198 = vpop.permute.xlu0 %2197
        %2201 = vset.pattern.permute.xlu0 0
        %2202 = vperm.xlu0 %2201, %v2088
        %v2203 = vpop.permute.xlu0 %2202
        %2206 = vset.pattern.permute.xlu0 0
        %2207 = vperm.xlu0 %2206, %v2089
        %v2208 = vpop.permute.xlu0 %2207
        %2211 = vset.pattern.permute.xlu0 0
        %2212 = vperm.xlu0 %2211, %v2090
        %v2213 = vpop.permute.xlu0 %2212
        %2216 = vset.pattern.permute.xlu0 0
        %2217 = vperm.xlu0 %2216, %v2091
        %v2218 = vpop.permute.xlu0 %2217
        %2221 = vset.pattern.permute.xlu0 0
        %2222 = vperm.xlu0 %2221, %v2092
        %v2223 = vpop.permute.xlu0 %2222
        %2226 = vset.pattern.permute.xlu0 0
        %2227 = vperm.xlu0 %2226, %v2093
        %v2228 = vpop.permute.xlu0 %2227
        %2231 = vset.pattern.permute.xlu0 0
        %2232 = vperm.xlu0 %2231, %v2094
        %v2233 = vpop.permute.xlu0 %2232
        %2236 = vset.pattern.permute.xlu0 0
        %2237 = vperm.xlu0 %2236, %v2095
        %v2238 = vpop.permute.xlu0 %2237
        %2241 = vset.pattern.permute.xlu0 0
        %2242 = vperm.xlu0 %2241, %v2096
        %v2243 = vpop.permute.xlu0 %2242
        %2246 = vset.pattern.permute.xlu0 0
        %2247 = vperm.xlu0 %2246, %v2097
        %v2248 = vpop.permute.xlu0 %2247
        %2251 = vset.pattern.permute.xlu0 0
        %2252 = vperm.xlu0 %2251, %v2098
        %v2253 = vpop.permute.xlu0 %2252
        %2256 = vset.pattern.permute.xlu0 0
        %2257 = vperm.xlu0 %2256, %v2099
        %v2258 = vpop.permute.xlu0 %2257
        %v2260 = vrcp.pop %v2103
        %v2261 = vmul.f32 %v2036, %v2260
        %v2262 = vrcp.pop %v2108
        %v2263 = vmul.f32 %v2037, %v2262
        %v2264 = vrcp.pop %v2113
        %v2265 = vmul.f32 %v2038, %v2264
        %v2266 = vrcp.pop %v2118
        %v2267 = vmul.f32 %v2039, %v2266
        %v2268 = vrcp.pop %v2123
        %v2269 = vmul.f32 %v2040, %v2268
        %v2270 = vrcp.pop %v2128
        %v2271 = vmul.f32 %v2041, %v2270
        %v2272 = vrcp.pop %v2133
        %v2273 = vmul.f32 %v2042, %v2272
        %v2274 = vrcp.pop %v2138
        %v2275 = vmul.f32 %v2043, %v2274
        %v2276 = vrcp.pop %v2143
        %v2277 = vmul.f32 %v2044, %v2276
        %v2278 = vrcp.pop %v2148
        %v2279 = vmul.f32 %v2045, %v2278
        %v2280 = vrcp.pop %v2153
        %v2281 = vmul.f32 %v2046, %v2280
        %v2282 = vrcp.pop %v2158
        %v2283 = vmul.f32 %v2047, %v2282
        %v2284 = vrcp.pop %v2163
        %v2285 = vmul.f32 %v2048, %v2284
        %v2286 = vrcp.pop %v2168
        %v2287 = vmul.f32 %v2049, %v2286
        %v2288 = vrcp.pop %v2173
        %v2289 = vmul.f32 %v2050, %v2288
        %v2290 = vrcp.pop %v2178
        %v2291 = vmul.f32 %v2051, %v2290
        %v2292 = vrcp.pop %v2183
        %v2293 = vmul.f32 %v2052, %v2292
        %v2294 = vrcp.pop %v2188
        %v2295 = vmul.f32 %v2053, %v2294
        %v2296 = vrcp.pop %v2193
        %v2297 = vmul.f32 %v2054, %v2296
        %v2298 = vrcp.pop %v2198
        %v2299 = vmul.f32 %v2055, %v2298
        %v2300 = vrcp.pop %v2203
        %v2301 = vmul.f32 %v2056, %v2300
        %v2302 = vrcp.pop %v2208
        %v2303 = vmul.f32 %v2057, %v2302
        %v2304 = vrcp.pop %v2213
        %v2305 = vmul.f32 %v2058, %v2304
        %v2306 = vrcp.pop %v2218
        %v2307 = vmul.f32 %v2059, %v2306
        %v2308 = vrcp.pop %v2223
        %v2309 = vmul.f32 %v2060, %v2308
        %v2310 = vrcp.pop %v2228
        %v2311 = vmul.f32 %v2061, %v2310
        %v2312 = vrcp.pop %v2233
        %v2313 = vmul.f32 %v2062, %v2312
        %v2314 = vrcp.pop %v2238
        %v2315 = vmul.f32 %v2063, %v2314
        %v2316 = vrcp.pop %v2243
        %v2317 = vmul.f32 %v2064, %v2316
        %v2318 = vrcp.pop %v2248
        %v2319 = vmul.f32 %v2065, %v2318
        %v2320 = vrcp.pop %v2253
        %v2321 = vmul.f32 %v2066, %v2320
        %v2322 = vrcp.pop %v2258
        %v2323 = vmul.f32 %v2067, %v2322
        %2324 = vst.msk [vmem:[%s314] sm:$0xff] %vm2000, %v2261
        %2325 = vst.msk [vmem:[%s314 + $0x8] sm:$0xff] %vm2000, %v2263
        %2326 = vst.msk [vmem:[%s314 + $0x10] sm:$0xff] %vm2000, %v2265
        %2327 = vst.msk [vmem:[%s314 + $0x18] sm:$0xff] %vm2000, %v2267
        %2328 = vst.msk [vmem:[%s314 + $0x20] sm:$0xff] %vm2000, %v2269
        %2329 = vst.msk [vmem:[%s314 + $0x28] sm:$0xff] %vm2000, %v2271
        %2330 = vst.msk [vmem:[%s314 + $0x30] sm:$0xff] %vm2000, %v2273
        %2331 = vst.msk [vmem:[%s314 + $0x38] sm:$0xff] %vm2000, %v2275
        %2332 = vst.msk [vmem:[%s314 + $0x40] sm:$0xff] %vm2000, %v2277
        %2333 = vst.msk [vmem:[%s314 + $0x48] sm:$0xff] %vm2000, %v2279
        %2334 = vst.msk [vmem:[%s314 + $0x50] sm:$0xff] %vm2000, %v2281
        %2335 = vst.msk [vmem:[%s314 + $0x58] sm:$0xff] %vm2000, %v2283
        %2336 = vst.msk [vmem:[%s314 + $0x60] sm:$0xff] %vm2000, %v2285
        %2337 = vst.msk [vmem:[%s314 + $0x68] sm:$0xff] %vm2000, %v2287
        %2338 = vst.msk [vmem:[%s314 + $0x70] sm:$0xff] %vm2000, %v2289
        %2339 = vst.msk [vmem:[%s314 + $0x78] sm:$0xff] %vm2000, %v2291
        %2340 = vst.msk [vmem:[%s314 + $0x80] sm:$0xff] %vm2000, %v2293
        %2341 = vst.msk [vmem:[%s314 + $0x88] sm:$0xff] %vm2000, %v2295
        %2342 = vst.msk [vmem:[%s314 + $0x90] sm:$0xff] %vm2000, %v2297
        %2343 = vst.msk [vmem:[%s314 + $0x98] sm:$0xff] %vm2000, %v2299
        %2344 = vst.msk [vmem:[%s314 + $0xa0] sm:$0xff] %vm2000, %v2301
        %2345 = vst.msk [vmem:[%s314 + $0xa8] sm:$0xff] %vm2000, %v2303
        %2346 = vst.msk [vmem:[%s314 + $0xb0] sm:$0xff] %vm2000, %v2305
        %2347 = vst.msk [vmem:[%s314 + $0xb8] sm:$0xff] %vm2000, %v2307
        %2348 = vst.msk [vmem:[%s314 + $0xc0] sm:$0xff] %vm2000, %v2309
        %2349 = vst.msk [vmem:[%s314 + $0xc8] sm:$0xff] %vm2000, %v2311
        %2350 = vst.msk [vmem:[%s314 + $0xd0] sm:$0xff] %vm2000, %v2313
        %2351 = vst.msk [vmem:[%s314 + $0xd8] sm:$0xff] %vm2000, %v2315
        %2352 = vst.msk [vmem:[%s314 + $0xe0] sm:$0xff] %vm2000, %v2317
        %2353 = vst.msk [vmem:[%s314 + $0xe8] sm:$0xff] %vm2000, %v2319
        %2354 = vst.msk [vmem:[%s314 + $0xf0] sm:$0xff] %vm2000, %v2321
        %2355 = vst.msk [vmem:[%s314 + $0xf8] sm:$0xff] %vm2000, %v2323
      $region44: #{tpu_custom_call.1} parent=35 // pred_fallthru
        _
      %s2356 = smul.u32 32, %s21
      %p2357 = scmp.lt.s32.totalorder %s20, 1
      %s2358 = scalar_select %p2357, %s20, 1
      %p2359 = scmp.lt.s32.totalorder %s2356, 31
      %s2360 = scalar_select %p2359, %s2356, 31
      %s2361 = smul.addr %s2358, 32
      %s2362 = sadd.s32 %s2360, %s2361
      %s2363 = smul.addr %s2362, 8
      %s2364 = scalar_lea.vmem %s4, %s2363
      // Predicated region
      $region45: #{tpu_custom_call.1} parent=35 // pred_check
        %p2365 = pneg %p159
      $region46: #{tpu_custom_call.1} parent=35 // pred_check_branch
        %2367 = sbr.rel (%p2365) target = $region48
      $region47: #{tpu_custom_call.1} parent=35 // pred_region
        %s2368 = smul.u32 32, %s21
      $region48: #{tpu_custom_call.1} parent=35 // pred_fallthru
        _
    $region36: #{tpu_custom_call.1} parent=5 // pred_fallthru
      _
    %p2369 = scmp.le.s32.totalorder 2, %s10
    // Predicated region
    $region49: #{tpu_custom_call.1} parent=5 // pred_check
      %p2370 = pneg %p2369
    $region50: #{tpu_custom_call.1} parent=5 // pred_check_branch
      %2372 = sbr.rel (%p2370) target = $region52
    $region51: #{tpu_custom_call.1} parent=5 // pred_region
      %s2373 = ssub.s32 %s10, 2
      // Predicated region
      $region53: #{tpu_custom_call.1} parent=51 // pred_check
        %p2374 = pneg %p165
      $region54: #{tpu_custom_call.1} parent=51 // pred_check_branch
        %2376 = sbr.rel (%p2374) target = $region56
      $region55: #{tpu_custom_call.1} parent=51 // pred_region
        %s2377 = smul.u32 32, %s24
        %p2378 = scmp.lt.s32.totalorder %s23, 1
        %s2379 = scalar_select %p2378, %s23, 1
        %p2380 = scmp.lt.s32.totalorder %s2377, 31
        %s2381 = scalar_select %p2380, %s2377, 31
        %s2382 = smul.addr %s2379, 32
        %s2383 = sadd.s32 %s2381, %s2382
        %s2384 = smul.addr %s2383, 8
        %s2385 = scalar_lea.vmem %s4, %s2384
      $region56: #{tpu_custom_call.1} parent=51 // pred_fallthru
        _
    $region52: #{tpu_custom_call.1} parent=5 // pred_fallthru
      _
  $region6: #{tpu_custom_call.1} parent=0 // loop_footer
    %s14 = sadd.s32 1, %s10
  $region7: #{tpu_custom_call.1} parent=0 // loop_footer_branch
    %9 = sbr.rel target = $region3
  $region8: #{tpu_custom_call.1} parent=0 // loop_exit
    _

</llo_original>
